<compile_context>
chip_gen: v6e
topology: v6e:2x2x1
jax: 0.10.0
libtpu: 0.0.40
codegen_flags: <defaults>
</compile_context>

<pallas_src>
import jax
import jax.numpy as jnp
from jax.experimental import pallas as pl
from jax.experimental.pallas import tpu as pltpu


# Safe scoped-VMEM limit on every generation (v5e/v6e 128 MiB, v7x 64 MiB).
_VMEM_LIMIT_BYTES = 48 * 1024 * 1024
# Fused (A fully VMEM-resident) path threshold: bf16 A at N_pad=2048 is 8 MiB.
_FUSED_NPAD_MAX = 2048


# ----------------------------------------------------------------------------
# Kernels
# ----------------------------------------------------------------------------
def gcn_layer_kernel(a_ref, x_ref, w_ref, b_ref, o_ref, acc_ref):
    """One GraphConv layer: relu((A @ X) @ W + b), tiled over (rows, A-cols).

    a_ref: (TM, TK) bf16 tile of Ahat.
    x_ref: (N_pad, H_pad) bf16, VMEM-resident (constant index_map), sliced by
           the reduction index k so X is DMA'd once per layer, not per row tile.
    acc_ref: (TM, H_pad) f32 accumulator.
    """
    k = pl.program_id(1)
    tk = a_ref.shape[1]

    @pl.when(k == 0)
    def _():
        acc_ref[...] = jnp.zeros_like(acc_ref)

    start = pl.multiple_of(k * tk, tk)
    # bf16 x bf16 MXU matmul, f32 accumulation.
    acc_ref[...] += jnp.dot(a_ref[...], x_ref[pl.ds(start, tk), :],
                            preferred_element_type=jnp.float32)

    @pl.when(k == pl.num_programs(1) - 1)
    def _():
        y = jnp.dot(acc_ref[...], w_ref[...],
                    preferred_element_type=jnp.float32) + b_ref[...]
        # ReLU on every layer is exact: inner layers use activation=relu and
        # the last layer is followed by the module's outer ReLU.
        o_ref[...] = jnp.maximum(y, 0.0).astype(o_ref.dtype)


def gru_kernel(h_ref, wih_ref, whh_ref, bih_ref, bhh_ref, o_ref):
    """GRUCell on h. The time-encode contribution cos(t*f+p) @ W_t is already
    folded into bih (it is constant w.r.t. the grid), so the kernel is two
    fused lane-dense (TM, Hp) @ (Hp, 3*Hp) matmuls plus elementwise gates."""
    h = h_ref[...].astype(jnp.float32)                    # (TM, Hp)
    hp = h.shape[1]

    gi = (jnp.dot(h, wih_ref[...], preferred_element_type=jnp.float32)
          + bih_ref[...])                                 # (TM, 3*Hp)
    gh = (jnp.dot(h, whh_ref[...], preferred_element_type=jnp.float32)
          + bhh_ref[...])                                 # (TM, 3*Hp)

    r = jax.nn.sigmoid(gi[:, 0:hp] + gh[:, 0:hp])
    z = jax.nn.sigmoid(gi[:, hp:2 * hp] + gh[:, hp:2 * hp])
    n = jnp.tanh(gi[:, 2 * hp:3 * hp] + r * gh[:, 2 * hp:3 * hp])
    o_ref[...] = (1.0 - z) * n + z * h


def fused_kernel(a_ref, x_ref, gw_ref, gb_ref, wih_ref, whh_ref,
                 bih_ref, bhh_ref, o_ref):
    """Small/medium-graph path: all k_hop GCN hops + GRU in one invocation.

    A (bf16) and all weights are VMEM-resident; no inter-layer HBM traffic.
    """
    h = x_ref[...].astype(jnp.float32)                    # (N_pad, H_pad)
    k_hop = gw_ref.shape[0]
    for l in range(k_hop):                                # static unroll
        ax = jnp.dot(a_ref[...], h.astype(jnp.bfloat16),
                     preferred_element_type=jnp.float32)
        h = jnp.maximum(
            jnp.dot(ax, gw_ref[l], preferred_element_type=jnp.float32)
            + gb_ref[l], 0.0)

    hp = h.shape[1]
    gi = (jnp.dot(h, wih_ref[...], preferred_element_type=jnp.float32)
          + bih_ref[...])
    gh = (jnp.dot(h, whh_ref[...], preferred_element_type=jnp.float32)
          + bhh_ref[...])
    r = jax.nn.sigmoid(gi[:, 0:hp] + gh[:, 0:hp])
    z = jax.nn.sigmoid(gi[:, hp:2 * hp] + gh[:, hp:2 * hp])
    n = jnp.tanh(gi[:, 2 * hp:3 * hp] + r * gh[:, 2 * hp:3 * hp])
    o_ref[...] = (1.0 - z) * n + z * h


# ----------------------------------------------------------------------------
# Wrapper / padding helpers
# ----------------------------------------------------------------------------
def _round_up(x, m):
    return ((x + m - 1) // m) * m


def _largest_tile(n, candidates):
    for t in candidates:
        if n % t == 0:
            return t
    return n


def _pad2d(x, rows, cols, dtype=jnp.float32):
    r, c = x.shape
    return jnp.zeros((rows, cols), dtype).at[:r, :c].set(x.astype(dtype))


def _fuse_gate_weights(w3, in_pad, h_pad):
    """(3, in_dim, H) -> (in_pad, 3*h_pad); gate g in cols [g*h_pad, g*h_pad+H)."""
    _, in_dim, h = w3.shape
    out = jnp.zeros((in_pad, 3 * h_pad), jnp.float32)
    for g in range(3):
        out = out.at[:in_dim, g * h_pad:g * h_pad + h].set(
            w3[g].astype(jnp.float32))
    return out


def _fuse_gate_bias(b3, h_pad):
    """(3, 1, H) -> (1, 3*h_pad)."""
    _, _, h = b3.shape
    out = jnp.zeros((1, 3 * h_pad), jnp.float32)
    for g in range(3):
        out = out.at[:, g * h_pad:g * h_pad + h].set(b3[g, 0].astype(jnp.float32))
    return out


def impact_function(t, a_hat, hidden, params, *, force_tiled=False):
    """Pallas forward. t: scalar time; a_hat: (N, N); hidden: (N, H)."""
    N, H = hidden.shape
    k_hop = params["gcn_w"].shape[0]
    f32, bf16 = jnp.float32, jnp.bfloat16

    H_pad = _round_up(H, 128)
    N_pad = _round_up(N, 128)

    # --- zero-pad inputs / weights so every tile & store is lane-dense ------
    # A and node features in bf16 (dominant HBM stream); weights / accum in f32.
    a_p = _pad2d(a_hat, N_pad, N_pad, bf16)
    x_p = _pad2d(hidden, N_pad, H_pad, bf16)
    gcn_w = jnp.stack([_pad2d(params["gcn_w"][l], H_pad, H_pad, f32)
                       for l in range(k_hop)])                     # (k,Hp,Hp)
    gcn_b = jnp.stack([_pad2d(params["gcn_b"][l], 1, H_pad, f32)
                       for l in range(k_hop)])                     # (k,1,Hp)

    # Fold the rank-1 time-encode contribution into b_ih once (O(T*3H), tiny):
    #   gi_t = cos(t*freq + phase) @ W_ih_time   (same for every node)
    te = jnp.cos(jnp.float32(t) * params["freq"].astype(f32)
                 + params["phase"].astype(f32))                    # (1, T)
    gi_t = jnp.einsum("ot,gth->goh", te, params["wih_t"].astype(f32))  # (3,1,H)

    wih = _fuse_gate_weights(params["wih_h"], H_pad, H_pad)        # (Hp, 3Hp)
    whh = _fuse_gate_weights(params["whh"], H_pad, H_pad)          # (Hp, 3Hp)
    bih = _fuse_gate_bias(params["bih"] + gi_t, H_pad)             # (1, 3Hp)
    bhh = _fuse_gate_bias(params["bhh"], H_pad)                    # (1, 3Hp)

    use_fused = (not force_tiled) and (N_pad <= _FUSED_NPAD_MAX)

    if use_fused:
        # --- fully-fused path: everything VMEM-resident, one invocation -----
        # TODO(synk): on v7x (2 TCs) small graphs leave one core idle here;
        # splitting rows across two tiles would need the inter-hop h exchanged.
        out_p = pl.pallas_call(
            fused_kernel,
            out_shape=jax.ShapeDtypeStruct((N_pad, H_pad), f32),
            grid=(1,),
            in_specs=[
                pl.BlockSpec((N_pad, N_pad), lambda i: (0, 0)),          # A (bf16)
                pl.BlockSpec((N_pad, H_pad), lambda i: (0, 0)),          # X (bf16)
                pl.BlockSpec((k_hop, H_pad, H_pad), lambda i: (0, 0, 0)),  # GCN W
                pl.BlockSpec((k_hop, 1, H_pad), lambda i: (0, 0, 0)),      # GCN b
                pl.BlockSpec((H_pad, 3 * H_pad), lambda i: (0, 0)),      # W_ih
                pl.BlockSpec((H_pad, 3 * H_pad), lambda i: (0, 0)),      # W_hh
                pl.BlockSpec((1, 3 * H_pad), lambda i: (0, 0)),          # b_ih(+te)
                pl.BlockSpec((1, 3 * H_pad), lambda i: (0, 0)),          # b_hh
            ],
            out_specs=pl.BlockSpec((N_pad, H_pad), lambda i: (0, 0)),
            compiler_params=pltpu.CompilerParams(
                dimension_semantics=("arbitrary",),
                vmem_limit_bytes=_VMEM_LIMIT_BYTES),
        )(a_p, x_p, gcn_w, gcn_b, wih, whh, bih, bhh)
        return out_p[:N, :H]

    # --- tiled path (large graphs): one pallas_call per hop -----------------
    TM = _largest_tile(N_pad, (512, 256, 128))
    TK = _largest_tile(N_pad, (2048, 1024, 512, 256, 128))
    TM_GRU = _largest_tile(N_pad, (256, 128))

    gcn_call = pl.pallas_call(
        gcn_layer_kernel,
        out_shape=jax.ShapeDtypeStruct((N_pad, H_pad), bf16),  # h stays bf16
        grid=(N_pad // TM, N_pad // TK),
        in_specs=[
            pl.BlockSpec((TM, TK), lambda i, k: (i, k)),         # A tile (bf16)
            pl.BlockSpec((N_pad, H_pad), lambda i, k: (0, 0)),   # X resident (bf16)
            pl.BlockSpec((H_pad, H_pad), lambda i, k: (0, 0)),   # W
            pl.BlockSpec((1, H_pad), lambda i, k: (0, 0)),       # b
        ],
        out_specs=pl.BlockSpec((TM, H_pad), lambda i, k: (i, 0)),
        scratch_shapes=[pltpu.VMEM((TM, H_pad), f32)],
        compiler_params=pltpu.CompilerParams(
            dimension_semantics=("parallel", "arbitrary"),
            vmem_limit_bytes=_VMEM_LIMIT_BYTES),
    )

    h = x_p
    for l in range(k_hop):
        h = gcn_call(a_p, h, gcn_w[l], gcn_b[l])

    out_p = pl.pallas_call(
        gru_kernel,
        out_shape=jax.ShapeDtypeStruct((N_pad, H_pad), f32),
        grid=(N_pad // TM_GRU,),
        in_specs=[
            pl.BlockSpec((TM_GRU, H_pad), lambda i: (i, 0)),     # h (bf16)
            pl.BlockSpec((H_pad, 3 * H_pad), lambda i: (0, 0)),  # W_ih
            pl.BlockSpec((H_pad, 3 * H_pad), lambda i: (0, 0)),  # W_hh
            pl.BlockSpec((1, 3 * H_pad), lambda i: (0, 0)),      # b_ih(+te)
            pl.BlockSpec((1, 3 * H_pad), lambda i: (0, 0)),      # b_hh
        ],
        out_specs=pl.BlockSpec((TM_GRU, H_pad), lambda i: (i, 0)),
        compiler_params=pltpu.CompilerParams(
            dimension_semantics=("parallel",),
            vmem_limit_bytes=_VMEM_LIMIT_BYTES),
    )(h, wih, whh, bih, bhh)

    return out_p[:N, :H]


# ----------------------------------------------------------------------------
# Plain-JAX f32 reference mirroring the PyTorch forward (explicit concat)
# ----------------------------------------------------------------------------
def reference(t, a_hat, hidden, p):
    te = jnp.cos(jnp.float32(t) * p["freq"] + p["phase"])          # (1, T)
    te = jnp.broadcast_to(te, (hidden.shape[0], te.shape[1]))
    x = hidden
    k_hop = p["gcn_w"].shape[0]
    for l in range(k_hop):
        x = a_hat @ (x @ p["gcn_w"][l]) + p["gcn_b"][l]
        if l < k_hop - 1:
            x = jnp.maximum(x, 0.0)
    h = jnp.maximum(x, 0.0)
    xcat = jnp.concatenate([h, te], axis=1)                        # (N, H+T)
    outs = []
    for i in range(3):
        w_i = jnp.concatenate([p["wih_h"][i], p["wih_t"][i]], axis=0)
        gi = xcat @ w_i + p["bih"][i]
        gh = h @ p["whh"][i] + p["bhh"][i]
        outs.append((gi, gh))
    (gi_r, gh_r), (gi_z, gh_z), (gi_n, gh_n) = outs
    r = jax.nn.sigmoid(gi_r + gh_r)
    z = jax.nn.sigmoid(gi_z + gh_z)
    n = jnp.tanh(gi_n + r * gh_n)
    return (1.0 - z) * n + z * h


def make_params(key, hidden_dim, time_dim, k_hop):
    ks = jax.random.split(key, 8)
    # TimeEncode: w = 1 / 10 ** linspace(0, 9, time_dim), bias = 0
    freq = (1.0 / (10.0 ** jnp.linspace(0.0, 9.0, time_dim))).reshape(1, time_dim)
    phase = jnp.zeros((1, time_dim), jnp.float32)
    gcn_w = 0.3 * jax.random.normal(ks[0], (k_hop, hidden_dim, hidden_dim), jnp.float32)
    gcn_b = 0.1 * jax.random.normal(ks[1], (k_hop, 1, hidden_dim), jnp.float32)
    # GRUCell parameters stored pre-transposed per gate (r, z, n):
    s = 1.0 / jnp.sqrt(hidden_dim)
    wih_h = jax.random.uniform(ks[2], (3, hidden_dim, hidden_dim), jnp.float32, -s, s)
    wih_t = jax.random.uniform(ks[3], (3, time_dim, hidden_dim), jnp.float32, -s, s)
    whh = jax.random.uniform(ks[4], (3, hidden_dim, hidden_dim), jnp.float32, -s, s)
    bih = jax.random.uniform(ks[5], (3, 1, hidden_dim), jnp.float32, -s, s)
    bhh = jax.random.uniform(ks[6], (3, 1, hidden_dim), jnp.float32, -s, s)
    return dict(freq=freq, phase=phase, gcn_w=gcn_w, gcn_b=gcn_b,
                wih_h=wih_h, wih_t=wih_t, whh=whh, bih=bih, bhh=bhh)


if __name__ == "__main__":
    N_NODES, HIDDEN_DIM, TIME_DIM, K_HOP = 8, 32, 16, 2
    key = jax.random.PRNGKey(0)
    k_adj, k_hid, k_par = jax.random.split(key, 3)

    # Synthetic undirected graph -> dense symmetric-normalized adjacency.
    upper = (jax.random.uniform(k_adj, (N_NODES, N_NODES)) < 0.4).astype(jnp.float32)
    adj = jnp.triu(upper, k=1)
    adj = adj + adj.T                                   # symmetric, no self loops
    deg = adj.sum(axis=1)
    dinv = jnp.where(deg > 0, 1.0 / jnp.sqrt(jnp.maximum(deg, 1e-12)), 0.0)
    a_hat = dinv[:, None] * adj * dinv[None, :]

    hidden = jax.random.normal(k_hid, (N_NODES, HIDDEN_DIM), jnp.float32)
    params = make_params(k_par, HIDDEN_DIM, TIME_DIM, K_HOP)
    t = 3.5  # scalar event time

    # Fused (small-graph) path — the default for this size.
    out_fused = jax.block_until_ready(impact_function(t, a_hat, hidden, params))
    # Tiled per-layer path — forced, to exercise the large-graph code path too.
    out_tiled = jax.block_until_ready(
        impact_function(t, a_hat, hidden, params, force_tiled=True))

    ref = jax.block_until_ready(reference(t, a_hat, hidden, params))
    assert out_fused.shape == (N_NODES, HIDDEN_DIM)
    assert out_tiled.shape == (N_NODES, HIDDEN_DIM)
    # bf16 A / inter-layer h (the review's top perf lever) loosens the
    # attainable tolerance vs. the f32 reference.
    for name, out in (("fused", out_fused), ("tiled", out_tiled)):
        err = float(jnp.max(jnp.abs(out - ref)))
        assert jnp.allclose(out, ref, atol=5e-2, rtol=5e-2), (
            f"{name} path max abs err = {err}")

    print("KERNEL_OK")
</pallas_src>

<mosaic_0001>
module attributes {stable_mosaic.version = 11 : i64} {
  func.func @fused_kernel(%arg0: i32, %arg1: memref<128x128xbf16, #tpu.memory_space<vmem>>, %arg2: memref<128x128xbf16, #tpu.memory_space<vmem>>, %arg3: memref<2x128x128xf32, #tpu.memory_space<vmem>>, %arg4: memref<2x1x128xf32, #tpu.memory_space<vmem>>, %arg5: memref<128x384xf32, #tpu.memory_space<vmem>>, %arg6: memref<128x384xf32, #tpu.memory_space<vmem>>, %arg7: memref<1x384xf32, #tpu.memory_space<vmem>>, %arg8: memref<1x384xf32, #tpu.memory_space<vmem>>, %arg9: memref<128x128xf32, #tpu.memory_space<vmem>>) attributes {dimension_semantics = [#tpu.dimension_semantics<arbitrary>], iteration_bounds = array<i64: 1>, scalar_prefetch = 0 : i64, scratch_operands = 0 : i64, tpu.core_type = #tpu.core_type<tc>, window_params = [{pipeline_mode = #tpu.pipeline_mode<synchronous>, transform_indices = @transform_0, window_bounds = array<i64: 128, 128>}, {pipeline_mode = #tpu.pipeline_mode<synchronous>, transform_indices = @transform_1, window_bounds = array<i64: 128, 128>}, {pipeline_mode = #tpu.pipeline_mode<synchronous>, transform_indices = @transform_2, window_bounds = array<i64: 2, 128, 128>}, {pipeline_mode = #tpu.pipeline_mode<synchronous>, transform_indices = @transform_3, window_bounds = array<i64: 2, 1, 128>}, {pipeline_mode = #tpu.pipeline_mode<synchronous>, transform_indices = @transform_4, window_bounds = array<i64: 128, 384>}, {pipeline_mode = #tpu.pipeline_mode<synchronous>, transform_indices = @transform_5, window_bounds = array<i64: 128, 384>}, {pipeline_mode = #tpu.pipeline_mode<synchronous>, transform_indices = @transform_6, window_bounds = array<i64: 1, 384>}, {pipeline_mode = #tpu.pipeline_mode<synchronous>, transform_indices = @transform_7, window_bounds = array<i64: 1, 384>}, {pipeline_mode = #tpu.pipeline_mode<synchronous>, transform_indices = @transform_8, window_bounds = array<i64: 128, 128>}]} {
    %c0 = arith.constant 0 : index
    %c0_0 = arith.constant 0 : index
    %0 = vector.load %arg2[%c0, %c0_0] : memref<128x128xbf16, #tpu.memory_space<vmem>>, vector<128x128xbf16>
    %1 = arith.extf %0 : vector<128x128xbf16> to vector<128x128xf32>
    %c0_1 = arith.constant 0 : index
    %c0_2 = arith.constant 0 : index
    %2 = vector.load %arg1[%c0_1, %c0_2] : memref<128x128xbf16, #tpu.memory_space<vmem>>, vector<128x128xbf16>
    %3 = arith.truncf %1 : vector<128x128xf32> to vector<128x128xbf16>
    %cst = arith.constant dense<0.000000e+00> : vector<128x128xf32>
    %4 = tpu.matmul %2, %3, %cst {dimension_numbers = #tpu.dot_dimension_numbers<[1], [0], [0], [1], [0, 0, 1, 1], [], []>} : vector<128x128xbf16>, vector<128x128xbf16>, vector<128x128xf32> -> vector<128x128xf32>
    %c0_3 = arith.constant 0 : index
    %c0_4 = arith.constant 0 : index
    %c0_5 = arith.constant 0 : index
    %5 = vector.load %arg3[%c0_3, %c0_4, %c0_5] : memref<2x128x128xf32, #tpu.memory_space<vmem>>, vector<1x128x128xf32>
    %6 = vector.shape_cast %5 : vector<1x128x128xf32> to vector<128x128xf32>
    %cst_6 = arith.constant dense<0.000000e+00> : vector<128x128xf32>
    %7 = tpu.matmul %4, %6, %cst_6 {dimension_numbers = #tpu.dot_dimension_numbers<[1], [0], [0], [1], [0, 0, 1, 1], [], []>} : vector<128x128xf32>, vector<128x128xf32>, vector<128x128xf32> -> vector<128x128xf32>
    %c0_7 = arith.constant 0 : index
    %c0_8 = arith.constant 0 : index
    %c0_9 = arith.constant 0 : index
    %8 = vector.load %arg4[%c0_7, %c0_8, %c0_9] : memref<2x1x128xf32, #tpu.memory_space<vmem>>, vector<1x1x128xf32>
    %9 = vector.shape_cast %8 : vector<1x1x128xf32> to vector<1x128xf32>
    %10 = vector.broadcast %9 : vector<1x128xf32> to vector<128x128xf32>
    %11 = arith.addf %7, %10 : vector<128x128xf32>
    %cst_10 = arith.constant 0.000000e+00 : f32
    %12 = vector.broadcast %cst_10 : f32 to vector<128x128xf32>
    %13 = arith.maximumf %11, %12 : vector<128x128xf32>
    %c0_11 = arith.constant 0 : index
    %c0_12 = arith.constant 0 : index
    %14 = vector.load %arg1[%c0_11, %c0_12] : memref<128x128xbf16, #tpu.memory_space<vmem>>, vector<128x128xbf16>
    %15 = arith.truncf %13 : vector<128x128xf32> to vector<128x128xbf16>
    %cst_13 = arith.constant dense<0.000000e+00> : vector<128x128xf32>
    %16 = tpu.matmul %14, %15, %cst_13 {dimension_numbers = #tpu.dot_dimension_numbers<[1], [0], [0], [1], [0, 0, 1, 1], [], []>} : vector<128x128xbf16>, vector<128x128xbf16>, vector<128x128xf32> -> vector<128x128xf32>
    %c1 = arith.constant 1 : index
    %c0_14 = arith.constant 0 : index
    %c0_15 = arith.constant 0 : index
    %17 = vector.load %arg3[%c1, %c0_14, %c0_15] : memref<2x128x128xf32, #tpu.memory_space<vmem>>, vector<1x128x128xf32>
    %18 = vector.shape_cast %17 : vector<1x128x128xf32> to vector<128x128xf32>
    %cst_16 = arith.constant dense<0.000000e+00> : vector<128x128xf32>
    %19 = tpu.matmul %16, %18, %cst_16 {dimension_numbers = #tpu.dot_dimension_numbers<[1], [0], [0], [1], [0, 0, 1, 1], [], []>} : vector<128x128xf32>, vector<128x128xf32>, vector<128x128xf32> -> vector<128x128xf32>
    %c1_17 = arith.constant 1 : index
    %c0_18 = arith.constant 0 : index
    %c0_19 = arith.constant 0 : index
    %20 = vector.load %arg4[%c1_17, %c0_18, %c0_19] : memref<2x1x128xf32, #tpu.memory_space<vmem>>, vector<1x1x128xf32>
    %21 = vector.shape_cast %20 : vector<1x1x128xf32> to vector<1x128xf32>
    %22 = vector.broadcast %21 : vector<1x128xf32> to vector<128x128xf32>
    %23 = arith.addf %19, %22 : vector<128x128xf32>
    %cst_20 = arith.constant 0.000000e+00 : f32
    %24 = vector.broadcast %cst_20 : f32 to vector<128x128xf32>
    %25 = arith.maximumf %23, %24 : vector<128x128xf32>
    %c0_21 = arith.constant 0 : index
    %c0_22 = arith.constant 0 : index
    %26 = vector.load %arg5[%c0_21, %c0_22] : memref<128x384xf32, #tpu.memory_space<vmem>>, vector<128x384xf32>
    %cst_23 = arith.constant dense<0.000000e+00> : vector<128x384xf32>
    %27 = tpu.matmul %25, %26, %cst_23 {dimension_numbers = #tpu.dot_dimension_numbers<[1], [0], [0], [1], [0, 0, 1, 1], [], []>} : vector<128x128xf32>, vector<128x384xf32>, vector<128x384xf32> -> vector<128x384xf32>
    %c0_24 = arith.constant 0 : index
    %c0_25 = arith.constant 0 : index
    %28 = vector.load %arg7[%c0_24, %c0_25] : memref<1x384xf32, #tpu.memory_space<vmem>>, vector<1x384xf32>
    %29 = vector.broadcast %28 : vector<1x384xf32> to vector<128x384xf32>
    %30 = arith.addf %27, %29 : vector<128x384xf32>
    %c0_26 = arith.constant 0 : index
    %c0_27 = arith.constant 0 : index
    %31 = vector.load %arg6[%c0_26, %c0_27] : memref<128x384xf32, #tpu.memory_space<vmem>>, vector<128x384xf32>
    %cst_28 = arith.constant dense<0.000000e+00> : vector<128x384xf32>
    %32 = tpu.matmul %25, %31, %cst_28 {dimension_numbers = #tpu.dot_dimension_numbers<[1], [0], [0], [1], [0, 0, 1, 1], [], []>} : vector<128x128xf32>, vector<128x384xf32>, vector<128x384xf32> -> vector<128x384xf32>
    %c0_29 = arith.constant 0 : index
    %c0_30 = arith.constant 0 : index
    %33 = vector.load %arg8[%c0_29, %c0_30] : memref<1x384xf32, #tpu.memory_space<vmem>>, vector<1x384xf32>
    %34 = vector.broadcast %33 : vector<1x384xf32> to vector<128x384xf32>
    %35 = arith.addf %32, %34 : vector<128x384xf32>
    %36 = vector.extract_strided_slice %30 {offsets = [0, 0], sizes = [128, 128], strides = [1, 1]} : vector<128x384xf32> to vector<128x128xf32>
    %37 = vector.extract_strided_slice %35 {offsets = [0, 0], sizes = [128, 128], strides = [1, 1]} : vector<128x384xf32> to vector<128x128xf32>
    %38 = arith.addf %36, %37 : vector<128x128xf32>
    %39 = arith.negf %38 : vector<128x128xf32>
    %40 = math.exp %39 : vector<128x128xf32>
    %cst_31 = arith.constant 1.000000e+00 : f32
    %41 = vector.broadcast %cst_31 : f32 to vector<128x128xf32>
    %42 = arith.addf %41, %40 : vector<128x128xf32>
    %43 = arith.divf %41, %42 : vector<128x128xf32>
    %44 = vector.extract_strided_slice %30 {offsets = [0, 128], sizes = [128, 128], strides = [1, 1]} : vector<128x384xf32> to vector<128x128xf32>
    %45 = vector.extract_strided_slice %35 {offsets = [0, 128], sizes = [128, 128], strides = [1, 1]} : vector<128x384xf32> to vector<128x128xf32>
    %46 = arith.addf %44, %45 : vector<128x128xf32>
    %47 = arith.negf %46 : vector<128x128xf32>
    %48 = math.exp %47 : vector<128x128xf32>
    %cst_32 = arith.constant 1.000000e+00 : f32
    %49 = vector.broadcast %cst_32 : f32 to vector<128x128xf32>
    %50 = arith.addf %49, %48 : vector<128x128xf32>
    %51 = arith.divf %49, %50 : vector<128x128xf32>
    %52 = vector.extract_strided_slice %30 {offsets = [0, 256], sizes = [128, 128], strides = [1, 1]} : vector<128x384xf32> to vector<128x128xf32>
    %53 = vector.extract_strided_slice %35 {offsets = [0, 256], sizes = [128, 128], strides = [1, 1]} : vector<128x384xf32> to vector<128x128xf32>
    %54 = arith.mulf %43, %53 : vector<128x128xf32>
    %55 = arith.addf %52, %54 : vector<128x128xf32>
    %56 = math.tanh %55 : vector<128x128xf32>
    %cst_33 = arith.constant 1.000000e+00 : f32
    %57 = vector.broadcast %cst_33 : f32 to vector<128x128xf32>
    %58 = arith.subf %57, %51 : vector<128x128xf32>
    %59 = arith.mulf %58, %56 : vector<128x128xf32>
    %60 = arith.mulf %51, %25 : vector<128x128xf32>
    %61 = arith.addf %59, %60 : vector<128x128xf32>
    %c0_34 = arith.constant 0 : index
    %c0_35 = arith.constant 0 : index
    %62 = vector.load %arg9[%c0_34, %c0_35] : memref<128x128xf32, #tpu.memory_space<vmem>>, vector<128x128xf32>
    tpu.vector_store %arg9[%c0_34, %c0_35], %61 {strides = array<i32>} : memref<128x128xf32, #tpu.memory_space<vmem>>, vector<128x128xf32>,
    return
  }
  func.func @transform_0(%arg0: i32) -> (i32, i32) {
    %c0_i32 = arith.constant 0 : i32
    %c0_i32_0 = arith.constant 0 : i32
    %c0_i32_1 = arith.constant 0 : i32
    return %c0_i32, %c0_i32_0 : i32, i32
  }
  func.func @transform_1(%arg0: i32) -> (i32, i32) {
    %c0_i32 = arith.constant 0 : i32
    %c0_i32_0 = arith.constant 0 : i32
    %c0_i32_1 = arith.constant 0 : i32
    return %c0_i32, %c0_i32_0 : i32, i32
  }
  func.func @transform_2(%arg0: i32) -> (i32, i32, i32) {
    %c0_i32 = arith.constant 0 : i32
    %c0_i32_0 = arith.constant 0 : i32
    %c0_i32_1 = arith.constant 0 : i32
    %c0_i32_2 = arith.constant 0 : i32
    return %c0_i32, %c0_i32_0, %c0_i32_1 : i32, i32, i32
  }
  func.func @transform_3(%arg0: i32) -> (i32, i32, i32) {
    %c0_i32 = arith.constant 0 : i32
    %c0_i32_0 = arith.constant 0 : i32
    %c0_i32_1 = arith.constant 0 : i32
    %c0_i32_2 = arith.constant 0 : i32
    return %c0_i32, %c0_i32_0, %c0_i32_1 : i32, i32, i32
  }
  func.func @transform_4(%arg0: i32) -> (i32, i32) {
    %c0_i32 = arith.constant 0 : i32
    %c0_i32_0 = arith.constant 0 : i32
    %c0_i32_1 = arith.constant 0 : i32
    return %c0_i32, %c0_i32_0 : i32, i32
  }
  func.func @transform_5(%arg0: i32) -> (i32, i32) {
    %c0_i32 = arith.constant 0 : i32
    %c0_i32_0 = arith.constant 0 : i32
    %c0_i32_1 = arith.constant 0 : i32
    return %c0_i32, %c0_i32_0 : i32, i32
  }
  func.func @transform_6(%arg0: i32) -> (i32, i32) {
    %c0_i32 = arith.constant 0 : i32
    %c0_i32_0 = arith.constant 0 : i32
    %c0_i32_1 = arith.constant 0 : i32
    return %c0_i32, %c0_i32_0 : i32, i32
  }
  func.func @transform_7(%arg0: i32) -> (i32, i32) {
    %c0_i32 = arith.constant 0 : i32
    %c0_i32_0 = arith.constant 0 : i32
    %c0_i32_1 = arith.constant 0 : i32
    return %c0_i32, %c0_i32_0 : i32, i32
  }
  func.func @transform_8(%arg0: i32) -> (i32, i32) {
    %c0_i32 = arith.constant 0 : i32
    %c0_i32_0 = arith.constant 0 : i32
    %c0_i32_1 = arith.constant 0 : i32
    return %c0_i32, %c0_i32_0 : i32, i32
  }
}

</mosaic_0001>

<llo_original>
// kernel: tpu_custom_call.1
$region0: #{tpu_custom_call.1}
  #allocation0 [shape = 'u32[]', space=smem, size = 0x4, offset = 0x4, fixed_abs, tag = 'smem constant byte address 0x4 - core index']
  #allocation1 [shape = 'u32[144,128]{1,0:T(1,128)}', space=vmem, size = 0x12000, scoped, tag = 'internal scratch']
  %s0 = inlined_call_operand.hbm [shape: bf16[128,128], index: 0, kind: input, shape index: {}]
  %s1 = inlined_call_operand.hbm [shape: bf16[128,128], index: 1, kind: input, shape index: {}]
  %s2 = inlined_call_operand.hbm [shape: f32[2,128,128], index: 2, kind: input, shape index: {}]
  %s3 = inlined_call_operand.hbm [shape: f32[2,1,128], index: 3, kind: input, shape index: {}]
  %s4 = inlined_call_operand.hbm [shape: f32[128,384], index: 4, kind: input, shape index: {}]
  %s5 = inlined_call_operand.hbm [shape: f32[128,384], index: 5, kind: input, shape index: {}]
  %s6 = inlined_call_operand.vmem [shape: f32[1,384], index: 6, kind: input, shape index: {}]
  %s7 = inlined_call_operand.vmem [shape: f32[1,384], index: 7, kind: input, shape index: {}]
  %s8 = inlined_call_operand.hbm [shape: f32[128,128], index: 8, kind: output, shape index: {}]
  %s9 = sld [smem:[#allocation0]]
  $region66: #{tpu_custom_call.1} parent=0
    _
  %s11 = ssub.s32 1, %s9
  %s12 = scalar_select 0, %s11, %s9
  $region1: #{tpu_custom_call.1} parent=0
    #allocation2 [shape = 'u8[32768]{0}', space=vmem, size = 0x8000, scoped, tag = 'input window, operand 0, single buffered']
    #allocation3 [shape = 's32[1]{0}', space=sflag, size = 0x4, scoped, tag = 'scoped memory for tpu_custom_call.1']
    #allocation4 [shape = 's32[1]{0}', space=sflag, size = 0x4, scoped, tag = 'scoped memory for tpu_custom_call.1']
    #allocation5 [shape = 'u8[32768]{0}', space=vmem, size = 0x8000, scoped, tag = 'input window, operand 1, single buffered']
    #allocation6 [shape = 's32[1]{0}', space=sflag, size = 0x4, scoped, tag = 'scoped memory for tpu_custom_call.1']
    #allocation7 [shape = 'u8[131072]{0}', space=vmem, size = 0x20000, scoped, tag = 'input window, operand 2, single buffered']
    #allocation8 [shape = 'u8[1024]{0}', space=vmem, size = 0x400, scoped, tag = 'input window, operand 3, single buffered']
    #allocation9 [shape = 's32[1]{0}', space=sflag, size = 0x4, scoped, tag = 'scoped memory for tpu_custom_call.1']
    #allocation10 [shape = 'u8[196608]{0}', space=vmem, size = 0x30000, scoped, tag = 'input window, operand 4, single buffered']
    #allocation11 [shape = 'u8[196608]{0}', space=vmem, size = 0x30000, scoped, tag = 'input window, operand 5, single buffered']
    #allocation12 [shape = 's32[1]{0}', space=sflag, size = 0x4, scoped, tag = 'scoped memory for tpu_custom_call.1']
    #allocation13 [shape = 'u8[65536]{0}', space=vmem, size = 0x10000, scoped, tag = 'output window, operand 0, single buffered']
    %13 = vsyncpa [#allocation3], 0
    %14 = vsyncpa [#allocation6], 0
    %15 = vsyncpa [#allocation9], 0
    %16 = vsyncpa [#allocation12], 0
    %17 = vsyncpa [#allocation4], 0
    // Predicated region
    $region2: #{tpu_custom_call.1} parent=1 // pred_check
      _
    $region3: #{tpu_custom_call.1} parent=1 // pred_check_branch
      %19 = sbr.rel (0) target = $region5
    $region4: #{tpu_custom_call.1} parent=1 // pred_region
      %s21 = ssub.s32 1024, 1024
      %22 = vsyncadd [#allocation3], %s21
      %s23 = sshll.u32 [#allocation2], 4
      %s24 = int_to_ptr.vmem [resolvable:$true] %s23
      %29 = dma.hbm_to_vmem [thread:$0]  %s0, 1024, %s24, [#allocation3], 64, 64, 4
    $region5: #{tpu_custom_call.1} parent=1 // pred_fallthru
      _
    // Predicated region
    $region6: #{tpu_custom_call.1} parent=1 // pred_check
      _
    $region7: #{tpu_custom_call.1} parent=1 // pred_check_branch
      %31 = sbr.rel (0) target = $region9
    $region8: #{tpu_custom_call.1} parent=1 // pred_region
      %s33 = ssub.s32 1024, 1024
      %34 = vsyncadd [#allocation6], %s33
      %s35 = sshll.u32 [#allocation5], 4
      %s36 = int_to_ptr.vmem [resolvable:$true] %s35
      %41 = dma.hbm_to_vmem [thread:$0]  %s1, 1024, %s36, [#allocation6], 64, 64, 4
    $region9: #{tpu_custom_call.1} parent=1 // pred_fallthru
      _
    // Predicated region
    $region10: #{tpu_custom_call.1} parent=1 // pred_check
      _
    $region11: #{tpu_custom_call.1} parent=1 // pred_check_branch
      %43 = sbr.rel (0) target = $region13
    $region12: #{tpu_custom_call.1} parent=1 // pred_region
      %s45 = ssub.s32 4096, 4096
      %46 = vsyncadd [#allocation6], %s45
      %s47 = sshll.u32 [#allocation7], 4
      %s48 = int_to_ptr.vmem [resolvable:$true] %s47
      %53 = dma.hbm_to_vmem [thread:$0]  %s2, 4096, %s48, [#allocation6], 128, 128, 8
    $region13: #{tpu_custom_call.1} parent=1 // pred_fallthru
      _
    // Predicated region
    $region14: #{tpu_custom_call.1} parent=1 // pred_check
      _
    $region15: #{tpu_custom_call.1} parent=1 // pred_check_branch
      %55 = sbr.rel (0) target = $region17
    $region16: #{tpu_custom_call.1} parent=1 // pred_region
      %s57 = ssub.s32 32, 32
      %58 = vsyncadd [#allocation9], %s57
      %s59 = sshll.u32 [#allocation8], 4
      %s60 = int_to_ptr.vmem [resolvable:$true] %s59
      %65 = dma.hbm_to_vmem [thread:$0]  %s3, 32, %s60, [#allocation9], 16, 16, 1
    $region17: #{tpu_custom_call.1} parent=1 // pred_fallthru
      _
    // Predicated region
    $region18: #{tpu_custom_call.1} parent=1 // pred_check
      _
    $region19: #{tpu_custom_call.1} parent=1 // pred_check_branch
      %67 = sbr.rel (0) target = $region21
    $region20: #{tpu_custom_call.1} parent=1 // pred_region
      %s69 = ssub.s32 6144, 6144
      %70 = vsyncadd [#allocation9], %s69
      %s71 = sshll.u32 [#allocation10], 4
      %s72 = int_to_ptr.vmem [resolvable:$true] %s71
      %77 = dma.hbm_to_vmem [thread:$0]  %s4, 6144, %s72, [#allocation9], 384, 384, 24
    $region21: #{tpu_custom_call.1} parent=1 // pred_fallthru
      _
    // Predicated region
    $region22: #{tpu_custom_call.1} parent=1 // pred_check
      _
    $region23: #{tpu_custom_call.1} parent=1 // pred_check_branch
      %79 = sbr.rel (0) target = $region25
    $region24: #{tpu_custom_call.1} parent=1 // pred_region
      %s81 = ssub.s32 6144, 6144
      %82 = vsyncadd [#allocation12], %s81
      %s83 = sshll.u32 [#allocation11], 4
      %s84 = int_to_ptr.vmem [resolvable:$true] %s83
      %89 = dma.hbm_to_vmem [thread:$0]  %s5, 6144, %s84, [#allocation12], 384, 384, 24
    $region25: #{tpu_custom_call.1} parent=1 // pred_fallthru
      _
    // Predicated region
    $region26: #{tpu_custom_call.1} parent=1 // pred_check
      _
    $region27: #{tpu_custom_call.1} parent=1 // pred_check_branch
      %91 = sbr.rel (0) target = $region29
    $region28: #{tpu_custom_call.1} parent=1 // pred_region
      _
    $region29: #{tpu_custom_call.1} parent=1 // pred_fallthru
      _
    // Predicated region
    $region30: #{tpu_custom_call.1} parent=1 // pred_check
      _
    $region31: #{tpu_custom_call.1} parent=1 // pred_check_branch
      %93 = sbr.rel (0) target = $region33
    $region32: #{tpu_custom_call.1} parent=1 // pred_region
      _
    $region33: #{tpu_custom_call.1} parent=1 // pred_fallthru
      _
    // Predicated region
    $region34: #{tpu_custom_call.1} parent=1 // pred_check
      _
    $region35: #{tpu_custom_call.1} parent=1 // pred_check_branch
      %95 = sbr.rel (0) target = $region37
    $region36: #{tpu_custom_call.1} parent=1 // pred_region
      %96 = dma.done [#allocation3], 1024
    $region37: #{tpu_custom_call.1} parent=1 // pred_fallthru
      _
    // Predicated region
    $region38: #{tpu_custom_call.1} parent=1 // pred_check
      _
    $region39: #{tpu_custom_call.1} parent=1 // pred_check_branch
      %98 = sbr.rel (0) target = $region41
    $region40: #{tpu_custom_call.1} parent=1 // pred_region
      %99 = dma.done [#allocation6], 1024
    $region41: #{tpu_custom_call.1} parent=1 // pred_fallthru
      _
    // Predicated region
    $region42: #{tpu_custom_call.1} parent=1 // pred_check
      _
    $region43: #{tpu_custom_call.1} parent=1 // pred_check_branch
      %101 = sbr.rel (0) target = $region45
    $region44: #{tpu_custom_call.1} parent=1 // pred_region
      %102 = dma.done [#allocation6], 4096
    $region45: #{tpu_custom_call.1} parent=1 // pred_fallthru
      _
    // Predicated region
    $region46: #{tpu_custom_call.1} parent=1 // pred_check
      _
    $region47: #{tpu_custom_call.1} parent=1 // pred_check_branch
      %104 = sbr.rel (0) target = $region49
    $region48: #{tpu_custom_call.1} parent=1 // pred_region
      %105 = dma.done [#allocation9], 32
    $region49: #{tpu_custom_call.1} parent=1 // pred_fallthru
      _
    // Predicated region
    $region50: #{tpu_custom_call.1} parent=1 // pred_check
      _
    $region51: #{tpu_custom_call.1} parent=1 // pred_check_branch
      %107 = sbr.rel (0) target = $region53
    $region52: #{tpu_custom_call.1} parent=1 // pred_region
      %108 = dma.done [#allocation9], 6144
    $region53: #{tpu_custom_call.1} parent=1 // pred_fallthru
      _
    // Predicated region
    $region54: #{tpu_custom_call.1} parent=1 // pred_check
      _
    $region55: #{tpu_custom_call.1} parent=1 // pred_check_branch
      %110 = sbr.rel (0) target = $region57
    $region56: #{tpu_custom_call.1} parent=1 // pred_region
      %111 = dma.done [#allocation12], 6144
    $region57: #{tpu_custom_call.1} parent=1 // pred_fallthru
      _
    %v113 = vld [vmem:[#allocation5] sm:$0xf]
    %v114 = vld [vmem:[#allocation5 + $0x4] sm:$0xf]
    %v115 = vld [vmem:[#allocation5 + $0x8] sm:$0xf]
    %v116 = vld [vmem:[#allocation5 + $0xc] sm:$0xf]
    %v117 = vld [vmem:[#allocation5 + $0x10] sm:$0xf]
    %v118 = vld [vmem:[#allocation5 + $0x14] sm:$0xf]
    %v119 = vld [vmem:[#allocation5 + $0x18] sm:$0xf]
    %v120 = vld [vmem:[#allocation5 + $0x1c] sm:$0xf]
    %v121 = vld [vmem:[#allocation5 + $0x20] sm:$0xf]
    %v122 = vld [vmem:[#allocation5 + $0x24] sm:$0xf]
    %v123 = vld [vmem:[#allocation5 + $0x28] sm:$0xf]
    %v124 = vld [vmem:[#allocation5 + $0x2c] sm:$0xf]
    %v125 = vld [vmem:[#allocation5 + $0x30] sm:$0xf]
    %v126 = vld [vmem:[#allocation5 + $0x34] sm:$0xf]
    %v127 = vld [vmem:[#allocation5 + $0x38] sm:$0xf]
    %v128 = vld [vmem:[#allocation5 + $0x3c] sm:$0xf]
    %v129 = vld [vmem:[#allocation2] sm:$0xf]
    %v130 = vld [vmem:[#allocation2 + $0x4] sm:$0xf]
    %v131 = vld [vmem:[#allocation2 + $0x8] sm:$0xf]
    %v132 = vld [vmem:[#allocation2 + $0xc] sm:$0xf]
    %v133 = vld [vmem:[#allocation2 + $0x10] sm:$0xf]
    %v134 = vld [vmem:[#allocation2 + $0x14] sm:$0xf]
    %v135 = vld [vmem:[#allocation2 + $0x18] sm:$0xf]
    %v136 = vld [vmem:[#allocation2 + $0x1c] sm:$0xf]
    %v137 = vld [vmem:[#allocation2 + $0x20] sm:$0xf]
    %v138 = vld [vmem:[#allocation2 + $0x24] sm:$0xf]
    %v139 = vld [vmem:[#allocation2 + $0x28] sm:$0xf]
    %v140 = vld [vmem:[#allocation2 + $0x2c] sm:$0xf]
    %v141 = vld [vmem:[#allocation2 + $0x30] sm:$0xf]
    %v142 = vld [vmem:[#allocation2 + $0x34] sm:$0xf]
    %v143 = vld [vmem:[#allocation2 + $0x38] sm:$0xf]
    %v144 = vld [vmem:[#allocation2 + $0x3c] sm:$0xf]
    %v161 = vunpack.c.l.b16 %v129
    %v162 = vunpack.c.l.b16 %v130
    %v163 = vunpack.c.l.b16 %v131
    %v164 = vunpack.c.l.b16 %v132
    %v165 = vunpack.c.l.b16 %v133
    %v166 = vunpack.c.l.b16 %v134
    %v167 = vunpack.c.l.b16 %v135
    %v168 = vunpack.c.l.b16 %v136
    %v169 = vunpack.c.l.b16 %v137
    %v170 = vunpack.c.l.b16 %v138
    %v171 = vunpack.c.l.b16 %v139
    %v172 = vunpack.c.l.b16 %v140
    %v173 = vunpack.c.l.b16 %v141
    %v174 = vunpack.c.l.b16 %v142
    %v175 = vunpack.c.l.b16 %v143
    %v176 = vunpack.c.l.b16 %v144
    %v177 = vpack.c.b16 %v162, %v161
    %v178 = vpack.c.b16 %v164, %v163
    %v179 = vpack.c.b16 %v166, %v165
    %v180 = vpack.c.b16 %v168, %v167
    %v181 = vpack.c.b16 %v170, %v169
    %v182 = vpack.c.b16 %v172, %v171
    %v183 = vpack.c.b16 %v174, %v173
    %v184 = vpack.c.b16 %v176, %v175
    %v209 = vunpack.c.l.b16 %v113
    %v210 = vunpack.c.l.b16 %v114
    %v211 = vunpack.c.l.b16 %v115
    %v212 = vunpack.c.l.b16 %v116
    %v213 = vunpack.c.l.b16 %v117
    %v214 = vunpack.c.l.b16 %v118
    %v215 = vunpack.c.l.b16 %v119
    %v216 = vunpack.c.l.b16 %v120
    %v217 = vunpack.c.l.b16 %v121
    %v218 = vunpack.c.l.b16 %v122
    %v219 = vunpack.c.l.b16 %v123
    %v220 = vunpack.c.l.b16 %v124
    %v221 = vunpack.c.l.b16 %v125
    %v222 = vunpack.c.l.b16 %v126
    %v223 = vunpack.c.l.b16 %v127
    %v224 = vunpack.c.l.b16 %v128
    %v225 = vpack.c.b16 %v210, %v209
    %v226 = vpack.c.b16 %v212, %v211
    %v227 = vpack.c.b16 %v214, %v213
    %v228 = vpack.c.b16 %v216, %v215
    %v229 = vpack.c.b16 %v218, %v217
    %v230 = vpack.c.b16 %v220, %v219
    %v231 = vpack.c.b16 %v222, %v221
    %v232 = vpack.c.b16 %v224, %v223
    %241 = vmatprep.subr.bf16.mxu0 0
    %242 = vmatpush1.bf16.msra.mxu0 %v232
    %243 = vmatprep.subr.bf16.mxu0 0
    %244 = vmatpush1.bf16.msra.mxu0 %v231
    %245 = vmatprep.subr.bf16.mxu0 0
    %246 = vmatpush1.bf16.msra.mxu0 %v230
    %247 = vmatprep.subr.bf16.mxu0 0
    %248 = vmatpush1.bf16.msra.mxu0 %v229
    %249 = vmatprep.subr.bf16.mxu0 0
    %250 = vmatpush1.bf16.msra.mxu0 %v228
    %251 = vmatprep.subr.bf16.mxu0 0
    %252 = vmatpush1.bf16.msra.mxu0 %v227
    %253 = vmatprep.subr.bf16.mxu0 0
    %254 = vmatpush1.bf16.msra.mxu0 %v226
    %255 = vmatprep.subr.bf16.mxu0 0
    %256 = vmatpush1.bf16.msra.mxu0 %v225
    %257 = vmatprep.subr.bf16.mxu0 0
    %258 = vmatpush2.bf16.msra.mxu0 0
    %259 = vmatprep.subr.bf16.mxu0 0
    %260 = vmatpush2.bf16.msra.mxu0 0
    %261 = vmatprep.subr.bf16.mxu0 0
    %262 = vmatpush2.bf16.msra.mxu0 0
    %263 = vmatprep.subr.bf16.mxu0 0
    %264 = vmatpush2.bf16.msra.mxu0 0
    %265 = vmatprep.subr.bf16.mxu0 0
    %266 = vmatpush2.bf16.msra.mxu0 0
    %267 = vmatprep.subr.bf16.mxu0 0
    %268 = vmatpush2.bf16.msra.mxu0 0
    %269 = vmatprep.subr.bf16.mxu0 0
    %270 = vmatpush2.bf16.msra.mxu0 0
    %271 = vmatprep.subr.bf16.mxu0 0
    %272 = vmatpush2.bf16.msra.mxu0 0
    %273 = vmatprep.mubr.bf16.mxu0 0
    %274 = vmatmul.mubr.bf16.gmra.mxu0 %v177
    %v275 = vpop.f32.mrf.mxu0
    %v276 = vadd.f32 0.0, %v275
    %v277 = vpop.f32.mrf.mxu0
    %v278 = vpop.f32.mrf.mxu0
    %v279 = vadd.f32 0.0, %v278
    %v280 = vpop.f32.mrf.mxu0
    %281 = vmatprep.mubr.bf16.mxu0 0
    %282 = vmatmul.mubr.bf16.gmra.mxu0 %v178
    %v283 = vpop.f32.mrf.mxu0
    %v284 = vadd.f32 0.0, %v283
    %v285 = vpop.f32.mrf.mxu0
    %v286 = vpop.f32.mrf.mxu0
    %v287 = vadd.f32 0.0, %v286
    %v288 = vpop.f32.mrf.mxu0
    %289 = vmatprep.mubr.bf16.mxu0 0
    %290 = vmatmul.mubr.bf16.gmra.mxu0 %v179
    %v291 = vpop.f32.mrf.mxu0
    %v292 = vadd.f32 0.0, %v291
    %v293 = vpop.f32.mrf.mxu0
    %v294 = vpop.f32.mrf.mxu0
    %v295 = vadd.f32 0.0, %v294
    %v296 = vpop.f32.mrf.mxu0
    %297 = vmatprep.mubr.bf16.mxu0 0
    %298 = vmatmul.mubr.bf16.gmra.mxu0 %v180
    %v299 = vpop.f32.mrf.mxu0
    %v300 = vadd.f32 0.0, %v299
    %v301 = vpop.f32.mrf.mxu0
    %v302 = vpop.f32.mrf.mxu0
    %v303 = vadd.f32 0.0, %v302
    %v304 = vpop.f32.mrf.mxu0
    %305 = vmatprep.mubr.bf16.mxu0 0
    %306 = vmatmul.mubr.bf16.gmra.mxu0 %v181
    %v307 = vpop.f32.mrf.mxu0
    %v308 = vadd.f32 0.0, %v307
    %v309 = vpop.f32.mrf.mxu0
    %v310 = vpop.f32.mrf.mxu0
    %v311 = vadd.f32 0.0, %v310
    %v312 = vpop.f32.mrf.mxu0
    %313 = vmatprep.mubr.bf16.mxu0 0
    %314 = vmatmul.mubr.bf16.gmra.mxu0 %v182
    %v315 = vpop.f32.mrf.mxu0
    %v316 = vadd.f32 0.0, %v315
    %v317 = vpop.f32.mrf.mxu0
    %v318 = vpop.f32.mrf.mxu0
    %v319 = vadd.f32 0.0, %v318
    %v320 = vpop.f32.mrf.mxu0
    %321 = vmatprep.mubr.bf16.mxu0 0
    %322 = vmatmul.mubr.bf16.gmra.mxu0 %v183
    %v323 = vpop.f32.mrf.mxu0
    %v324 = vadd.f32 0.0, %v323
    %v325 = vpop.f32.mrf.mxu0
    %v326 = vpop.f32.mrf.mxu0
    %v327 = vadd.f32 0.0, %v326
    %v328 = vpop.f32.mrf.mxu0
    %329 = vmatprep.mubr.bf16.mxu0 0
    %330 = vmatmul.mubr.bf16.gmra.mxu0 %v184
    %v331 = vpop.f32.mrf.mxu0
    %v332 = vadd.f32 0.0, %v331
    %v333 = vpop.f32.mrf.mxu0
    %v334 = vpop.f32.mrf.mxu0
    %v335 = vadd.f32 0.0, %v334
    %v336 = vpop.f32.mrf.mxu0
    %337 = vdwg.mxu0
    %v338 = vld [vmem:[#allocation7] sm:$0xff]
    %v339 = vld [vmem:[#allocation7 + $0x8] sm:$0xff]
    %v340 = vld [vmem:[#allocation7 + $0x10] sm:$0xff]
    %v341 = vld [vmem:[#allocation7 + $0x18] sm:$0xff]
    %v342 = vld [vmem:[#allocation7 + $0x20] sm:$0xff]
    %v343 = vld [vmem:[#allocation7 + $0x28] sm:$0xff]
    %v344 = vld [vmem:[#allocation7 + $0x30] sm:$0xff]
    %v345 = vld [vmem:[#allocation7 + $0x38] sm:$0xff]
    %v346 = vld [vmem:[#allocation7 + $0x40] sm:$0xff]
    %v347 = vld [vmem:[#allocation7 + $0x48] sm:$0xff]
    %v348 = vld [vmem:[#allocation7 + $0x50] sm:$0xff]
    %v349 = vld [vmem:[#allocation7 + $0x58] sm:$0xff]
    %v350 = vld [vmem:[#allocation7 + $0x60] sm:$0xff]
    %v351 = vld [vmem:[#allocation7 + $0x68] sm:$0xff]
    %v352 = vld [vmem:[#allocation7 + $0x70] sm:$0xff]
    %v353 = vld [vmem:[#allocation7 + $0x78] sm:$0xff]
    %v354 = vld [vmem:[#allocation8] sm:$0x1]
    %v356 = vlaneseq
    %v357 = vshrl.u32 %v356, 7
    %v358 = vsub.s32 0, %v357
    %v359 = vrot.slane %v354, %v358
    %361 = vmatprep.subr.mxu0 0.0
    %362 = vmatpush1.msra.mxu0 %v353
    %363 = vmatprep.subr.mxu0 0.0
    %364 = vmatpush1.msra.mxu0 %v352
    %365 = vmatprep.subr.mxu0 0.0
    %366 = vmatpush1.msra.mxu0 %v351
    %367 = vmatprep.subr.mxu0 0.0
    %368 = vmatpush1.msra.mxu0 %v350
    %369 = vmatprep.subr.mxu0 0.0
    %370 = vmatpush1.msra.mxu0 %v349
    %371 = vmatprep.subr.mxu0 0.0
    %372 = vmatpush1.msra.mxu0 %v348
    %373 = vmatprep.subr.mxu0 0.0
    %374 = vmatpush1.msra.mxu0 %v347
    %375 = vmatprep.subr.mxu0 0.0
    %376 = vmatpush1.msra.mxu0 %v346
    %377 = vmatprep.subr.mxu0 0.0
    %378 = vmatpush1.msra.mxu0 %v345
    %379 = vmatprep.subr.mxu0 0.0
    %380 = vmatpush1.msra.mxu0 %v344
    %381 = vmatprep.subr.mxu0 0.0
    %382 = vmatpush1.msra.mxu0 %v343
    %383 = vmatprep.subr.mxu0 0.0
    %384 = vmatpush1.msra.mxu0 %v342
    %385 = vmatprep.subr.mxu0 0.0
    %386 = vmatpush1.msra.mxu0 %v341
    %387 = vmatprep.subr.mxu0 0.0
    %388 = vmatpush1.msra.mxu0 %v340
    %389 = vmatprep.subr.mxu0 0.0
    %390 = vmatpush1.msra.mxu0 %v339
    %391 = vmatprep.subr.mxu0 0.0
    %392 = vmatpush1.msra.mxu0 %v338
    %393 = vmatprep.subr.mxu0 0.0
    %394 = vmatpush2.msra.mxu0 0.0
    %395 = vmatprep.subr.mxu0 0.0
    %396 = vmatpush2.msra.mxu0 0.0
    %397 = vmatprep.subr.mxu0 0.0
    %398 = vmatpush2.msra.mxu0 0.0
    %399 = vmatprep.subr.mxu0 0.0
    %400 = vmatpush2.msra.mxu0 0.0
    %401 = vmatprep.subr.mxu0 0.0
    %402 = vmatpush2.msra.mxu0 0.0
    %403 = vmatprep.subr.mxu0 0.0
    %404 = vmatpush2.msra.mxu0 0.0
    %405 = vmatprep.subr.mxu0 0.0
    %406 = vmatpush2.msra.mxu0 0.0
    %407 = vmatprep.subr.mxu0 0.0
    %408 = vmatpush2.msra.mxu0 0.0
    %409 = vmatprep.subr.mxu0 0.0
    %410 = vmatpush2.msra.mxu0 0.0
    %411 = vmatprep.subr.mxu0 0.0
    %412 = vmatpush2.msra.mxu0 0.0
    %413 = vmatprep.subr.mxu0 0.0
    %414 = vmatpush2.msra.mxu0 0.0
    %415 = vmatprep.subr.mxu0 0.0
    %416 = vmatpush2.msra.mxu0 0.0
    %417 = vmatprep.subr.mxu0 0.0
    %418 = vmatpush2.msra.mxu0 0.0
    %419 = vmatprep.subr.mxu0 0.0
    %420 = vmatpush2.msra.mxu0 0.0
    %421 = vmatprep.subr.mxu0 0.0
    %422 = vmatpush2.msra.mxu0 0.0
    %423 = vmatprep.subr.mxu0 0.0
    %424 = vmatpush2.msra.mxu0 0.0
    %425 = vmatprep.mubr.f32.mxu0 0.0
    %426 = vmatmul.mubr.f32.gmra.mxu0 %v276
    %v427 = vpop.f32.mrf.mxu0
    %v428 = vadd.f32 %v359, %v427
    %v429 = vpop.f32.mrf.mxu0
    %430 = vmatprep.mubr.f32.mxu0 0.0
    %431 = vmatmul.mubr.f32.gmra.mxu0 %v279
    %v432 = vpop.f32.mrf.mxu0
    %v433 = vadd.f32 %v359, %v432
    %v434 = vpop.f32.mrf.mxu0
    %435 = vmatprep.mubr.f32.mxu0 0.0
    %436 = vmatmul.mubr.f32.gmra.mxu0 %v284
    %v437 = vpop.f32.mrf.mxu0
    %v438 = vadd.f32 %v359, %v437
    %v439 = vpop.f32.mrf.mxu0
    %440 = vmatprep.mubr.f32.mxu0 0.0
    %441 = vmatmul.mubr.f32.gmra.mxu0 %v287
    %v442 = vpop.f32.mrf.mxu0
    %v443 = vadd.f32 %v359, %v442
    %v444 = vpop.f32.mrf.mxu0
    %445 = vmatprep.mubr.f32.mxu0 0.0
    %446 = vmatmul.mubr.f32.gmra.mxu0 %v292
    %v447 = vpop.f32.mrf.mxu0
    %v448 = vadd.f32 %v359, %v447
    %v449 = vpop.f32.mrf.mxu0
    %450 = vmatprep.mubr.f32.mxu0 0.0
    %451 = vmatmul.mubr.f32.gmra.mxu0 %v295
    %v452 = vpop.f32.mrf.mxu0
    %v453 = vadd.f32 %v359, %v452
    %v454 = vpop.f32.mrf.mxu0
    %455 = vmatprep.mubr.f32.mxu0 0.0
    %456 = vmatmul.mubr.f32.gmra.mxu0 %v300
    %v457 = vpop.f32.mrf.mxu0
    %v458 = vadd.f32 %v359, %v457
    %v459 = vpop.f32.mrf.mxu0
    %460 = vmatprep.mubr.f32.mxu0 0.0
    %461 = vmatmul.mubr.f32.gmra.mxu0 %v303
    %v462 = vpop.f32.mrf.mxu0
    %v463 = vadd.f32 %v359, %v462
    %v464 = vpop.f32.mrf.mxu0
    %465 = vmatprep.mubr.f32.mxu0 0.0
    %466 = vmatmul.mubr.f32.gmra.mxu0 %v308
    %v467 = vpop.f32.mrf.mxu0
    %v468 = vadd.f32 %v359, %v467
    %v469 = vpop.f32.mrf.mxu0
    %470 = vmatprep.mubr.f32.mxu0 0.0
    %471 = vmatmul.mubr.f32.gmra.mxu0 %v311
    %v472 = vpop.f32.mrf.mxu0
    %v473 = vadd.f32 %v359, %v472
    %v474 = vpop.f32.mrf.mxu0
    %475 = vmatprep.mubr.f32.mxu0 0.0
    %476 = vmatmul.mubr.f32.gmra.mxu0 %v316
    %v477 = vpop.f32.mrf.mxu0
    %v478 = vadd.f32 %v359, %v477
    %v479 = vpop.f32.mrf.mxu0
    %480 = vmatprep.mubr.f32.mxu0 0.0
    %481 = vmatmul.mubr.f32.gmra.mxu0 %v319
    %v482 = vpop.f32.mrf.mxu0
    %v483 = vadd.f32 %v359, %v482
    %v484 = vpop.f32.mrf.mxu0
    %485 = vmatprep.mubr.f32.mxu0 0.0
    %486 = vmatmul.mubr.f32.gmra.mxu0 %v324
    %v487 = vpop.f32.mrf.mxu0
    %v488 = vadd.f32 %v359, %v487
    %v489 = vpop.f32.mrf.mxu0
    %490 = vmatprep.mubr.f32.mxu0 0.0
    %491 = vmatmul.mubr.f32.gmra.mxu0 %v327
    %v492 = vpop.f32.mrf.mxu0
    %v493 = vadd.f32 %v359, %v492
    %v494 = vpop.f32.mrf.mxu0
    %495 = vmatprep.mubr.f32.mxu0 0.0
    %496 = vmatmul.mubr.f32.gmra.mxu0 %v332
    %v497 = vpop.f32.mrf.mxu0
    %v498 = vadd.f32 %v359, %v497
    %v499 = vpop.f32.mrf.mxu0
    %500 = vmatprep.mubr.f32.mxu0 0.0
    %501 = vmatmul.mubr.f32.gmra.mxu0 %v335
    %v502 = vpop.f32.mrf.mxu0
    %v503 = vadd.f32 %v359, %v502
    %v504 = vpop.f32.mrf.mxu0
    %505 = vdwg.mxu0
    %v506 = vmax.f32 %v428, 0.0
    %v507 = vmax.f32 %v433, 0.0
    %v508 = vmax.f32 %v438, 0.0
    %v509 = vmax.f32 %v443, 0.0
    %v510 = vmax.f32 %v448, 0.0
    %v511 = vmax.f32 %v453, 0.0
    %v512 = vmax.f32 %v458, 0.0
    %v513 = vmax.f32 %v463, 0.0
    %v514 = vmax.f32 %v468, 0.0
    %v515 = vmax.f32 %v473, 0.0
    %v516 = vmax.f32 %v478, 0.0
    %v517 = vmax.f32 %v483, 0.0
    %v518 = vmax.f32 %v488, 0.0
    %v519 = vmax.f32 %v493, 0.0
    %v520 = vmax.f32 %v498, 0.0
    %v521 = vmax.f32 %v503, 0.0
    %v522 = vpack.c.bf16 %v507, %v506
    %v523 = vpack.c.bf16 %v509, %v508
    %v524 = vpack.c.bf16 %v511, %v510
    %v525 = vpack.c.bf16 %v513, %v512
    %v526 = vpack.c.bf16 %v515, %v514
    %v527 = vpack.c.bf16 %v517, %v516
    %v528 = vpack.c.bf16 %v519, %v518
    %v529 = vpack.c.bf16 %v521, %v520
    %530 = vmatprep.subr.bf16.mxu0 0
    %531 = vmatpush1.bf16.msra.mxu0 %v529
    %532 = vmatprep.subr.bf16.mxu0 0
    %533 = vmatpush1.bf16.msra.mxu0 %v528
    %534 = vmatprep.subr.bf16.mxu0 0
    %535 = vmatpush1.bf16.msra.mxu0 %v527
    %536 = vmatprep.subr.bf16.mxu0 0
    %537 = vmatpush1.bf16.msra.mxu0 %v526
    %538 = vmatprep.subr.bf16.mxu0 0
    %539 = vmatpush1.bf16.msra.mxu0 %v525
    %540 = vmatprep.subr.bf16.mxu0 0
    %541 = vmatpush1.bf16.msra.mxu0 %v524
    %542 = vmatprep.subr.bf16.mxu0 0
    %543 = vmatpush1.bf16.msra.mxu0 %v523
    %544 = vmatprep.subr.bf16.mxu0 0
    %545 = vmatpush1.bf16.msra.mxu0 %v522
    %546 = vmatprep.subr.bf16.mxu0 0
    %547 = vmatpush2.bf16.msra.mxu0 0
    %548 = vmatprep.subr.bf16.mxu0 0
    %549 = vmatpush2.bf16.msra.mxu0 0
    %550 = vmatprep.subr.bf16.mxu0 0
    %551 = vmatpush2.bf16.msra.mxu0 0
    %552 = vmatprep.subr.bf16.mxu0 0
    %553 = vmatpush2.bf16.msra.mxu0 0
    %554 = vmatprep.subr.bf16.mxu0 0
    %555 = vmatpush2.bf16.msra.mxu0 0
    %556 = vmatprep.subr.bf16.mxu0 0
    %557 = vmatpush2.bf16.msra.mxu0 0
    %558 = vmatprep.subr.bf16.mxu0 0
    %559 = vmatpush2.bf16.msra.mxu0 0
    %560 = vmatprep.subr.bf16.mxu0 0
    %561 = vmatpush2.bf16.msra.mxu0 0
    %562 = vmatprep.mubr.bf16.mxu0 0
    %563 = vmatmul.mubr.bf16.gmra.mxu0 %v177
    %v564 = vpop.f32.mrf.mxu0
    %v565 = vadd.f32 0.0, %v564
    %v566 = vpop.f32.mrf.mxu0
    %v567 = vpop.f32.mrf.mxu0
    %v568 = vadd.f32 0.0, %v567
    %v569 = vpop.f32.mrf.mxu0
    %570 = vmatprep.mubr.bf16.mxu0 0
    %571 = vmatmul.mubr.bf16.gmra.mxu0 %v178
    %v572 = vpop.f32.mrf.mxu0
    %v573 = vadd.f32 0.0, %v572
    %v574 = vpop.f32.mrf.mxu0
    %v575 = vpop.f32.mrf.mxu0
    %v576 = vadd.f32 0.0, %v575
    %v577 = vpop.f32.mrf.mxu0
    %578 = vmatprep.mubr.bf16.mxu0 0
    %579 = vmatmul.mubr.bf16.gmra.mxu0 %v179
    %v580 = vpop.f32.mrf.mxu0
    %v581 = vadd.f32 0.0, %v580
    %v582 = vpop.f32.mrf.mxu0
    %v583 = vpop.f32.mrf.mxu0
    %v584 = vadd.f32 0.0, %v583
    %v585 = vpop.f32.mrf.mxu0
    %586 = vmatprep.mubr.bf16.mxu0 0
    %587 = vmatmul.mubr.bf16.gmra.mxu0 %v180
    %v588 = vpop.f32.mrf.mxu0
    %v589 = vadd.f32 0.0, %v588
    %v590 = vpop.f32.mrf.mxu0
    %v591 = vpop.f32.mrf.mxu0
    %v592 = vadd.f32 0.0, %v591
    %v593 = vpop.f32.mrf.mxu0
    %594 = vmatprep.mubr.bf16.mxu0 0
    %595 = vmatmul.mubr.bf16.gmra.mxu0 %v181
    %v596 = vpop.f32.mrf.mxu0
    %v597 = vadd.f32 0.0, %v596
    %v598 = vpop.f32.mrf.mxu0
    %v599 = vpop.f32.mrf.mxu0
    %v600 = vadd.f32 0.0, %v599
    %v601 = vpop.f32.mrf.mxu0
    %602 = vmatprep.mubr.bf16.mxu0 0
    %603 = vmatmul.mubr.bf16.gmra.mxu0 %v182
    %v604 = vpop.f32.mrf.mxu0
    %v605 = vadd.f32 0.0, %v604
    %v606 = vpop.f32.mrf.mxu0
    %v607 = vpop.f32.mrf.mxu0
    %v608 = vadd.f32 0.0, %v607
    %v609 = vpop.f32.mrf.mxu0
    %610 = vmatprep.mubr.bf16.mxu0 0
    %611 = vmatmul.mubr.bf16.gmra.mxu0 %v183
    %v612 = vpop.f32.mrf.mxu0
    %v613 = vadd.f32 0.0, %v612
    %v614 = vpop.f32.mrf.mxu0
    %v615 = vpop.f32.mrf.mxu0
    %v616 = vadd.f32 0.0, %v615
    %v617 = vpop.f32.mrf.mxu0
    %618 = vmatprep.mubr.bf16.mxu0 0
    %619 = vmatmul.mubr.bf16.gmra.mxu0 %v184
    %v620 = vpop.f32.mrf.mxu0
    %v621 = vadd.f32 0.0, %v620
    %v622 = vpop.f32.mrf.mxu0
    %v623 = vpop.f32.mrf.mxu0
    %v624 = vadd.f32 0.0, %v623
    %v625 = vpop.f32.mrf.mxu0
    %626 = vdwg.mxu0
    %s627 = scalar_lea.vmem [#allocation7], 128
    %v628 = vld [vmem:[%s627] sm:$0xff]
    %v629 = vld [vmem:[%s627 + $0x8] sm:$0xff]
    %v630 = vld [vmem:[%s627 + $0x10] sm:$0xff]
    %v631 = vld [vmem:[%s627 + $0x18] sm:$0xff]
    %v632 = vld [vmem:[%s627 + $0x20] sm:$0xff]
    %v633 = vld [vmem:[%s627 + $0x28] sm:$0xff]
    %v634 = vld [vmem:[%s627 + $0x30] sm:$0xff]
    %v635 = vld [vmem:[%s627 + $0x38] sm:$0xff]
    %v636 = vld [vmem:[%s627 + $0x40] sm:$0xff]
    %v637 = vld [vmem:[%s627 + $0x48] sm:$0xff]
    %v638 = vld [vmem:[%s627 + $0x50] sm:$0xff]
    %v639 = vld [vmem:[%s627 + $0x58] sm:$0xff]
    %v640 = vld [vmem:[%s627 + $0x60] sm:$0xff]
    %v641 = vld [vmem:[%s627 + $0x68] sm:$0xff]
    %v642 = vld [vmem:[%s627 + $0x70] sm:$0xff]
    %v643 = vld [vmem:[%s627 + $0x78] sm:$0xff]
    %s644 = scalar_lea.vmem [#allocation8], 1
    %v645 = vld [vmem:[%s644] sm:$0x1]
    %v647 = vlaneseq
    %v648 = vshrl.u32 %v647, 7
    %v649 = vsub.s32 0, %v648
    %v650 = vrot.slane %v645, %v649
    %652 = vmatprep.subr.mxu0 0.0
    %653 = vmatpush1.msra.mxu0 %v643
    %654 = vmatprep.subr.mxu0 0.0
    %655 = vmatpush1.msra.mxu0 %v642
    %656 = vmatprep.subr.mxu0 0.0
    %657 = vmatpush1.msra.mxu0 %v641
    %658 = vmatprep.subr.mxu0 0.0
    %659 = vmatpush1.msra.mxu0 %v640
    %660 = vmatprep.subr.mxu0 0.0
    %661 = vmatpush1.msra.mxu0 %v639
    %662 = vmatprep.subr.mxu0 0.0
    %663 = vmatpush1.msra.mxu0 %v638
    %664 = vmatprep.subr.mxu0 0.0
    %665 = vmatpush1.msra.mxu0 %v637
    %666 = vmatprep.subr.mxu0 0.0
    %667 = vmatpush1.msra.mxu0 %v636
    %668 = vmatprep.subr.mxu0 0.0
    %669 = vmatpush1.msra.mxu0 %v635
    %670 = vmatprep.subr.mxu0 0.0
    %671 = vmatpush1.msra.mxu0 %v634
    %672 = vmatprep.subr.mxu0 0.0
    %673 = vmatpush1.msra.mxu0 %v633
    %674 = vmatprep.subr.mxu0 0.0
    %675 = vmatpush1.msra.mxu0 %v632
    %676 = vmatprep.subr.mxu0 0.0
    %677 = vmatpush1.msra.mxu0 %v631
    %678 = vmatprep.subr.mxu0 0.0
    %679 = vmatpush1.msra.mxu0 %v630
    %680 = vmatprep.subr.mxu0 0.0
    %681 = vmatpush1.msra.mxu0 %v629
    %682 = vmatprep.subr.mxu0 0.0
    %683 = vmatpush1.msra.mxu0 %v628
    %684 = vmatprep.subr.mxu0 0.0
    %685 = vmatpush2.msra.mxu0 0.0
    %686 = vmatprep.subr.mxu0 0.0
    %687 = vmatpush2.msra.mxu0 0.0
    %688 = vmatprep.subr.mxu0 0.0
    %689 = vmatpush2.msra.mxu0 0.0
    %690 = vmatprep.subr.mxu0 0.0
    %691 = vmatpush2.msra.mxu0 0.0
    %692 = vmatprep.subr.mxu0 0.0
    %693 = vmatpush2.msra.mxu0 0.0
    %694 = vmatprep.subr.mxu0 0.0
    %695 = vmatpush2.msra.mxu0 0.0
    %696 = vmatprep.subr.mxu0 0.0
    %697 = vmatpush2.msra.mxu0 0.0
    %698 = vmatprep.subr.mxu0 0.0
    %699 = vmatpush2.msra.mxu0 0.0
    %700 = vmatprep.subr.mxu0 0.0
    %701 = vmatpush2.msra.mxu0 0.0
    %702 = vmatprep.subr.mxu0 0.0
    %703 = vmatpush2.msra.mxu0 0.0
    %704 = vmatprep.subr.mxu0 0.0
    %705 = vmatpush2.msra.mxu0 0.0
    %706 = vmatprep.subr.mxu0 0.0
    %707 = vmatpush2.msra.mxu0 0.0
    %708 = vmatprep.subr.mxu0 0.0
    %709 = vmatpush2.msra.mxu0 0.0
    %710 = vmatprep.subr.mxu0 0.0
    %711 = vmatpush2.msra.mxu0 0.0
    %712 = vmatprep.subr.mxu0 0.0
    %713 = vmatpush2.msra.mxu0 0.0
    %714 = vmatprep.subr.mxu0 0.0
    %715 = vmatpush2.msra.mxu0 0.0
    %716 = vmatprep.mubr.f32.mxu0 0.0
    %717 = vmatmul.mubr.f32.gmra.mxu0 %v565
    %v718 = vpop.f32.mrf.mxu0
    %v719 = vadd.f32 %v650, %v718
    %v720 = vpop.f32.mrf.mxu0
    %721 = vmatprep.mubr.f32.mxu0 0.0
    %722 = vmatmul.mubr.f32.gmra.mxu0 %v568
    %v723 = vpop.f32.mrf.mxu0
    %v724 = vadd.f32 %v650, %v723
    %v725 = vpop.f32.mrf.mxu0
    %726 = vmatprep.mubr.f32.mxu0 0.0
    %727 = vmatmul.mubr.f32.gmra.mxu0 %v573
    %v728 = vpop.f32.mrf.mxu0
    %v729 = vadd.f32 %v650, %v728
    %v730 = vpop.f32.mrf.mxu0
    %731 = vmatprep.mubr.f32.mxu0 0.0
    %732 = vmatmul.mubr.f32.gmra.mxu0 %v576
    %v733 = vpop.f32.mrf.mxu0
    %v734 = vadd.f32 %v650, %v733
    %v735 = vpop.f32.mrf.mxu0
    %736 = vmatprep.mubr.f32.mxu0 0.0
    %737 = vmatmul.mubr.f32.gmra.mxu0 %v581
    %v738 = vpop.f32.mrf.mxu0
    %v739 = vadd.f32 %v650, %v738
    %v740 = vpop.f32.mrf.mxu0
    %741 = vmatprep.mubr.f32.mxu0 0.0
    %742 = vmatmul.mubr.f32.gmra.mxu0 %v584
    %v743 = vpop.f32.mrf.mxu0
    %v744 = vadd.f32 %v650, %v743
    %v745 = vpop.f32.mrf.mxu0
    %746 = vmatprep.mubr.f32.mxu0 0.0
    %747 = vmatmul.mubr.f32.gmra.mxu0 %v589
    %v748 = vpop.f32.mrf.mxu0
    %v749 = vadd.f32 %v650, %v748
    %v750 = vpop.f32.mrf.mxu0
    %751 = vmatprep.mubr.f32.mxu0 0.0
    %752 = vmatmul.mubr.f32.gmra.mxu0 %v592
    %v753 = vpop.f32.mrf.mxu0
    %v754 = vadd.f32 %v650, %v753
    %v755 = vpop.f32.mrf.mxu0
    %756 = vmatprep.mubr.f32.mxu0 0.0
    %757 = vmatmul.mubr.f32.gmra.mxu0 %v597
    %v758 = vpop.f32.mrf.mxu0
    %v759 = vadd.f32 %v650, %v758
    %v760 = vpop.f32.mrf.mxu0
    %761 = vmatprep.mubr.f32.mxu0 0.0
    %762 = vmatmul.mubr.f32.gmra.mxu0 %v600
    %v763 = vpop.f32.mrf.mxu0
    %v764 = vadd.f32 %v650, %v763
    %v765 = vpop.f32.mrf.mxu0
    %766 = vmatprep.mubr.f32.mxu0 0.0
    %767 = vmatmul.mubr.f32.gmra.mxu0 %v605
    %v768 = vpop.f32.mrf.mxu0
    %v769 = vadd.f32 %v650, %v768
    %v770 = vpop.f32.mrf.mxu0
    %771 = vmatprep.mubr.f32.mxu0 0.0
    %772 = vmatmul.mubr.f32.gmra.mxu0 %v608
    %v773 = vpop.f32.mrf.mxu0
    %v774 = vadd.f32 %v650, %v773
    %v775 = vpop.f32.mrf.mxu0
    %776 = vmatprep.mubr.f32.mxu0 0.0
    %777 = vmatmul.mubr.f32.gmra.mxu0 %v613
    %v778 = vpop.f32.mrf.mxu0
    %v779 = vadd.f32 %v650, %v778
    %v780 = vpop.f32.mrf.mxu0
    %781 = vmatprep.mubr.f32.mxu0 0.0
    %782 = vmatmul.mubr.f32.gmra.mxu0 %v616
    %v783 = vpop.f32.mrf.mxu0
    %v784 = vadd.f32 %v650, %v783
    %v785 = vpop.f32.mrf.mxu0
    %786 = vmatprep.mubr.f32.mxu0 0.0
    %787 = vmatmul.mubr.f32.gmra.mxu0 %v621
    %v788 = vpop.f32.mrf.mxu0
    %v789 = vadd.f32 %v650, %v788
    %v790 = vpop.f32.mrf.mxu0
    %791 = vmatprep.mubr.f32.mxu0 0.0
    %792 = vmatmul.mubr.f32.gmra.mxu0 %v624
    %v793 = vpop.f32.mrf.mxu0
    %v794 = vadd.f32 %v650, %v793
    %v795 = vpop.f32.mrf.mxu0
    %796 = vdwg.mxu0
    %v797 = vmax.f32 %v719, 0.0
    %v798 = vmax.f32 %v724, 0.0
    %v799 = vmax.f32 %v729, 0.0
    %v800 = vmax.f32 %v734, 0.0
    %v801 = vmax.f32 %v739, 0.0
    %v802 = vmax.f32 %v744, 0.0
    %v803 = vmax.f32 %v749, 0.0
    %v804 = vmax.f32 %v754, 0.0
    %v805 = vmax.f32 %v759, 0.0
    %v806 = vmax.f32 %v764, 0.0
    %v807 = vmax.f32 %v769, 0.0
    %v808 = vmax.f32 %v774, 0.0
    %v809 = vmax.f32 %v779, 0.0
    %v810 = vmax.f32 %v784, 0.0
    %v811 = vmax.f32 %v789, 0.0
    %v812 = vmax.f32 %v794, 0.0
    %v813 = vld [vmem:[#allocation10] sm:$0xff]
    %v814 = vld [vmem:[#allocation10 + $0x8] sm:$0xff]
    %v815 = vld [vmem:[#allocation10 + $0x10] sm:$0xff]
    %v816 = vld [vmem:[#allocation10 + $0x18] sm:$0xff]
    %v817 = vld [vmem:[#allocation10 + $0x20] sm:$0xff]
    %v818 = vld [vmem:[#allocation10 + $0x28] sm:$0xff]
    %v819 = vld [vmem:[#allocation10 + $0x30] sm:$0xff]
    %v820 = vld [vmem:[#allocation10 + $0x38] sm:$0xff]
    %v821 = vld [vmem:[#allocation10 + $0x40] sm:$0xff]
    %v822 = vld [vmem:[#allocation10 + $0x48] sm:$0xff]
    %v823 = vld [vmem:[#allocation10 + $0x50] sm:$0xff]
    %v824 = vld [vmem:[#allocation10 + $0x58] sm:$0xff]
    %v825 = vld [vmem:[#allocation10 + $0x60] sm:$0xff]
    %v826 = vld [vmem:[#allocation10 + $0x68] sm:$0xff]
    %v827 = vld [vmem:[#allocation10 + $0x70] sm:$0xff]
    %v828 = vld [vmem:[#allocation10 + $0x78] sm:$0xff]
    %v829 = vld [vmem:[#allocation10 + $0x80] sm:$0xff]
    %v830 = vld [vmem:[#allocation10 + $0x88] sm:$0xff]
    %v831 = vld [vmem:[#allocation10 + $0x90] sm:$0xff]
    %v832 = vld [vmem:[#allocation10 + $0x98] sm:$0xff]
    %v833 = vld [vmem:[#allocation10 + $0xa0] sm:$0xff]
    %v834 = vld [vmem:[#allocation10 + $0xa8] sm:$0xff]
    %v835 = vld [vmem:[#allocation10 + $0xb0] sm:$0xff]
    %v836 = vld [vmem:[#allocation10 + $0xb8] sm:$0xff]
    %v837 = vld [vmem:[#allocation10 + $0xc0] sm:$0xff]
    %v838 = vld [vmem:[#allocation10 + $0xc8] sm:$0xff]
    %v839 = vld [vmem:[#allocation10 + $0xd0] sm:$0xff]
    %v840 = vld [vmem:[#allocation10 + $0xd8] sm:$0xff]
    %v841 = vld [vmem:[#allocation10 + $0xe0] sm:$0xff]
    %v842 = vld [vmem:[#allocation10 + $0xe8] sm:$0xff]
    %v843 = vld [vmem:[#allocation10 + $0xf0] sm:$0xff]
    %v844 = vld [vmem:[#allocation10 + $0xf8] sm:$0xff]
    %v845 = vld [vmem:[#allocation10 + $0x100] sm:$0xff]
    %v846 = vld [vmem:[#allocation10 + $0x108] sm:$0xff]
    %v847 = vld [vmem:[#allocation10 + $0x110] sm:$0xff]
    %v848 = vld [vmem:[#allocation10 + $0x118] sm:$0xff]
    %v849 = vld [vmem:[#allocation10 + $0x120] sm:$0xff]
    %v850 = vld [vmem:[#allocation10 + $0x128] sm:$0xff]
    %v851 = vld [vmem:[#allocation10 + $0x130] sm:$0xff]
    %v852 = vld [vmem:[#allocation10 + $0x138] sm:$0xff]
    %v853 = vld [vmem:[#allocation10 + $0x140] sm:$0xff]
    %v854 = vld [vmem:[#allocation10 + $0x148] sm:$0xff]
    %v855 = vld [vmem:[#allocation10 + $0x150] sm:$0xff]
    %v856 = vld [vmem:[#allocation10 + $0x158] sm:$0xff]
    %v857 = vld [vmem:[#allocation10 + $0x160] sm:$0xff]
    %v858 = vld [vmem:[#allocation10 + $0x168] sm:$0xff]
    %v859 = vld [vmem:[#allocation10 + $0x170] sm:$0xff]
    %v860 = vld [vmem:[#allocation10 + $0x178] sm:$0xff]
    %v861 = vld [vmem:[%s6] sm:$0x7]
    %v863 = vlaneseq
    %v864 = vshrl.u32 %v863, 7
    %v865 = vsub.s32 0, %v864
    %v866 = vrot.slane %v861, %v865
    %v867 = vlaneseq
    %v868 = vshrl.u32 %v867, 7
    %v869 = vsub.s32 1, %v868
    %v870 = vrot.slane %v861, %v869
    %v871 = vlaneseq
    %v872 = vshrl.u32 %v871, 7
    %v873 = vsub.s32 2, %v872
    %v874 = vrot.slane %v861, %v873
    %878 = vmatprep.subr.mxu0 %v859
    %879 = vmatpush1.msra.mxu0 %v858
    %880 = vmatprep.subr.mxu0 %v856
    %881 = vmatpush1.msra.mxu0 %v855
    %882 = vmatprep.subr.mxu0 %v853
    %883 = vmatpush1.msra.mxu0 %v852
    %884 = vmatprep.subr.mxu0 %v850
    %885 = vmatpush1.msra.mxu0 %v849
    %886 = vmatprep.subr.mxu0 %v847
    %887 = vmatpush1.msra.mxu0 %v846
    %888 = vmatprep.subr.mxu0 %v844
    %889 = vmatpush1.msra.mxu0 %v843
    %890 = vmatprep.subr.mxu0 %v841
    %891 = vmatpush1.msra.mxu0 %v840
    %892 = vmatprep.subr.mxu0 %v838
    %893 = vmatpush1.msra.mxu0 %v837
    %894 = vmatprep.subr.mxu0 %v835
    %895 = vmatpush1.msra.mxu0 %v834
    %896 = vmatprep.subr.mxu0 %v832
    %897 = vmatpush1.msra.mxu0 %v831
    %898 = vmatprep.subr.mxu0 %v829
    %899 = vmatpush1.msra.mxu0 %v828
    %900 = vmatprep.subr.mxu0 %v826
    %901 = vmatpush1.msra.mxu0 %v825
    %902 = vmatprep.subr.mxu0 %v823
    %903 = vmatpush1.msra.mxu0 %v822
    %904 = vmatprep.subr.mxu0 %v820
    %905 = vmatpush1.msra.mxu0 %v819
    %906 = vmatprep.subr.mxu0 %v817
    %907 = vmatpush1.msra.mxu0 %v816
    %908 = vmatprep.subr.mxu0 %v814
    %909 = vmatpush1.msra.mxu0 %v813
    %910 = vmatprep.subr.mxu0 0.0
    %911 = vmatpush2.msra.mxu0 0.0
    %912 = vmatprep.subr.mxu0 0.0
    %913 = vmatpush2.msra.mxu0 0.0
    %914 = vmatprep.subr.mxu0 0.0
    %915 = vmatpush2.msra.mxu0 0.0
    %916 = vmatprep.subr.mxu0 0.0
    %917 = vmatpush2.msra.mxu0 0.0
    %918 = vmatprep.subr.mxu0 0.0
    %919 = vmatpush2.msra.mxu0 0.0
    %920 = vmatprep.subr.mxu0 0.0
    %921 = vmatpush2.msra.mxu0 0.0
    %922 = vmatprep.subr.mxu0 0.0
    %923 = vmatpush2.msra.mxu0 0.0
    %924 = vmatprep.subr.mxu0 0.0
    %925 = vmatpush2.msra.mxu0 0.0
    %926 = vmatprep.subr.mxu0 0.0
    %927 = vmatpush2.msra.mxu0 0.0
    %928 = vmatprep.subr.mxu0 0.0
    %929 = vmatpush2.msra.mxu0 0.0
    %930 = vmatprep.subr.mxu0 0.0
    %931 = vmatpush2.msra.mxu0 0.0
    %932 = vmatprep.subr.mxu0 0.0
    %933 = vmatpush2.msra.mxu0 0.0
    %934 = vmatprep.subr.mxu0 0.0
    %935 = vmatpush2.msra.mxu0 0.0
    %936 = vmatprep.subr.mxu0 0.0
    %937 = vmatpush2.msra.mxu0 0.0
    %938 = vmatprep.subr.mxu0 0.0
    %939 = vmatpush2.msra.mxu0 0.0
    %940 = vmatprep.subr.mxu0 0.0
    %941 = vmatpush2.msra.mxu0 0.0
    %942 = vmatprep.mubr.f32.mxu0 0.0
    %943 = vmatmul.mubr.f32.gmra.mxu0 %v797
    %v944 = vpop.f32.mrf.mxu0
    %v945 = vadd.f32 %v866, %v944
    %v946 = vpop.f32.mrf.mxu0
    %v947 = vadd.f32 %v870, %v946
    %948 = vmatprep.mubr.f32.mxu0 0.0
    %949 = vmatmul.mubr.f32.gmra.mxu0 %v798
    %v950 = vpop.f32.mrf.mxu0
    %v951 = vadd.f32 %v866, %v950
    %v952 = vpop.f32.mrf.mxu0
    %v953 = vadd.f32 %v870, %v952
    %954 = vmatprep.mubr.f32.mxu0 0.0
    %955 = vmatmul.mubr.f32.gmra.mxu0 %v799
    %v956 = vpop.f32.mrf.mxu0
    %v957 = vadd.f32 %v866, %v956
    %v958 = vpop.f32.mrf.mxu0
    %v959 = vadd.f32 %v870, %v958
    %960 = vmatprep.mubr.f32.mxu0 0.0
    %961 = vmatmul.mubr.f32.gmra.mxu0 %v800
    %v962 = vpop.f32.mrf.mxu0
    %v963 = vadd.f32 %v866, %v962
    %v964 = vpop.f32.mrf.mxu0
    %v965 = vadd.f32 %v870, %v964
    %966 = vmatprep.mubr.f32.mxu0 0.0
    %967 = vmatmul.mubr.f32.gmra.mxu0 %v801
    %v968 = vpop.f32.mrf.mxu0
    %v969 = vadd.f32 %v866, %v968
    %v970 = vpop.f32.mrf.mxu0
    %v971 = vadd.f32 %v870, %v970
    %972 = vmatprep.mubr.f32.mxu0 0.0
    %973 = vmatmul.mubr.f32.gmra.mxu0 %v802
    %v974 = vpop.f32.mrf.mxu0
    %v975 = vadd.f32 %v866, %v974
    %v976 = vpop.f32.mrf.mxu0
    %v977 = vadd.f32 %v870, %v976
    %978 = vmatprep.mubr.f32.mxu0 0.0
    %979 = vmatmul.mubr.f32.gmra.mxu0 %v803
    %v980 = vpop.f32.mrf.mxu0
    %v981 = vadd.f32 %v866, %v980
    %v982 = vpop.f32.mrf.mxu0
    %v983 = vadd.f32 %v870, %v982
    %984 = vmatprep.mubr.f32.mxu0 0.0
    %985 = vmatmul.mubr.f32.gmra.mxu0 %v804
    %v986 = vpop.f32.mrf.mxu0
    %v987 = vadd.f32 %v866, %v986
    %v988 = vpop.f32.mrf.mxu0
    %v989 = vadd.f32 %v870, %v988
    %990 = vmatprep.mubr.f32.mxu0 0.0
    %991 = vmatmul.mubr.f32.gmra.mxu0 %v805
    %v992 = vpop.f32.mrf.mxu0
    %v993 = vadd.f32 %v866, %v992
    %v994 = vpop.f32.mrf.mxu0
    %v995 = vadd.f32 %v870, %v994
    %996 = vmatprep.mubr.f32.mxu0 0.0
    %997 = vmatmul.mubr.f32.gmra.mxu0 %v806
    %v998 = vpop.f32.mrf.mxu0
    %v999 = vadd.f32 %v866, %v998
    %v1000 = vpop.f32.mrf.mxu0
    %v1001 = vadd.f32 %v870, %v1000
    %1002 = vmatprep.mubr.f32.mxu0 0.0
    %1003 = vmatmul.mubr.f32.gmra.mxu0 %v807
    %v1004 = vpop.f32.mrf.mxu0
    %v1005 = vadd.f32 %v866, %v1004
    %v1006 = vpop.f32.mrf.mxu0
    %v1007 = vadd.f32 %v870, %v1006
    %1008 = vmatprep.mubr.f32.mxu0 0.0
    %1009 = vmatmul.mubr.f32.gmra.mxu0 %v808
    %v1010 = vpop.f32.mrf.mxu0
    %v1011 = vadd.f32 %v866, %v1010
    %v1012 = vpop.f32.mrf.mxu0
    %v1013 = vadd.f32 %v870, %v1012
    %1014 = vmatprep.mubr.f32.mxu0 0.0
    %1015 = vmatmul.mubr.f32.gmra.mxu0 %v809
    %v1016 = vpop.f32.mrf.mxu0
    %v1017 = vadd.f32 %v866, %v1016
    %v1018 = vpop.f32.mrf.mxu0
    %v1019 = vadd.f32 %v870, %v1018
    %1020 = vmatprep.mubr.f32.mxu0 0.0
    %1021 = vmatmul.mubr.f32.gmra.mxu0 %v810
    %v1022 = vpop.f32.mrf.mxu0
    %v1023 = vadd.f32 %v866, %v1022
    %v1024 = vpop.f32.mrf.mxu0
    %v1025 = vadd.f32 %v870, %v1024
    %1026 = vmatprep.mubr.f32.mxu0 0.0
    %1027 = vmatmul.mubr.f32.gmra.mxu0 %v811
    %v1028 = vpop.f32.mrf.mxu0
    %v1029 = vadd.f32 %v866, %v1028
    %v1030 = vpop.f32.mrf.mxu0
    %v1031 = vadd.f32 %v870, %v1030
    %1032 = vmatprep.mubr.f32.mxu0 0.0
    %1033 = vmatmul.mubr.f32.gmra.mxu0 %v812
    %v1034 = vpop.f32.mrf.mxu0
    %v1035 = vadd.f32 %v866, %v1034
    %v1036 = vpop.f32.mrf.mxu0
    %v1037 = vadd.f32 %v870, %v1036
    %1038 = vdwg.mxu0
    %1039 = vmatprep.subr.mxu0 0.0
    %1040 = vmatpush1.msra.mxu0 %v860
    %1041 = vmatprep.subr.mxu0 0.0
    %1042 = vmatpush1.msra.mxu0 %v857
    %1043 = vmatprep.subr.mxu0 0.0
    %1044 = vmatpush1.msra.mxu0 %v854
    %1045 = vmatprep.subr.mxu0 0.0
    %1046 = vmatpush1.msra.mxu0 %v851
    %1047 = vmatprep.subr.mxu0 0.0
    %1048 = vmatpush1.msra.mxu0 %v848
    %1049 = vmatprep.subr.mxu0 0.0
    %1050 = vmatpush1.msra.mxu0 %v845
    %1051 = vmatprep.subr.mxu0 0.0
    %1052 = vmatpush1.msra.mxu0 %v842
    %1053 = vmatprep.subr.mxu0 0.0
    %1054 = vmatpush1.msra.mxu0 %v839
    %1055 = vmatprep.subr.mxu0 0.0
    %1056 = vmatpush1.msra.mxu0 %v836
    %1057 = vmatprep.subr.mxu0 0.0
    %1058 = vmatpush1.msra.mxu0 %v833
    %1059 = vmatprep.subr.mxu0 0.0
    %1060 = vmatpush1.msra.mxu0 %v830
    %1061 = vmatprep.subr.mxu0 0.0
    %1062 = vmatpush1.msra.mxu0 %v827
    %1063 = vmatprep.subr.mxu0 0.0
    %1064 = vmatpush1.msra.mxu0 %v824
    %1065 = vmatprep.subr.mxu0 0.0
    %1066 = vmatpush1.msra.mxu0 %v821
    %1067 = vmatprep.subr.mxu0 0.0
    %1068 = vmatpush1.msra.mxu0 %v818
    %1069 = vmatprep.subr.mxu0 0.0
    %1070 = vmatpush1.msra.mxu0 %v815
    %1071 = vmatprep.subr.mxu0 0.0
    %1072 = vmatpush2.msra.mxu0 0.0
    %1073 = vmatprep.subr.mxu0 0.0
    %1074 = vmatpush2.msra.mxu0 0.0
    %1075 = vmatprep.subr.mxu0 0.0
    %1076 = vmatpush2.msra.mxu0 0.0
    %1077 = vmatprep.subr.mxu0 0.0
    %1078 = vmatpush2.msra.mxu0 0.0
    %1079 = vmatprep.subr.mxu0 0.0
    %1080 = vmatpush2.msra.mxu0 0.0
    %1081 = vmatprep.subr.mxu0 0.0
    %1082 = vmatpush2.msra.mxu0 0.0
    %1083 = vmatprep.subr.mxu0 0.0
    %1084 = vmatpush2.msra.mxu0 0.0
    %1085 = vmatprep.subr.mxu0 0.0
    %1086 = vmatpush2.msra.mxu0 0.0
    %1087 = vmatprep.subr.mxu0 0.0
    %1088 = vmatpush2.msra.mxu0 0.0
    %1089 = vmatprep.subr.mxu0 0.0
    %1090 = vmatpush2.msra.mxu0 0.0
    %1091 = vmatprep.subr.mxu0 0.0
    %1092 = vmatpush2.msra.mxu0 0.0
    %1093 = vmatprep.subr.mxu0 0.0
    %1094 = vmatpush2.msra.mxu0 0.0
    %1095 = vmatprep.subr.mxu0 0.0
    %1096 = vmatpush2.msra.mxu0 0.0
    %1097 = vmatprep.subr.mxu0 0.0
    %1098 = vmatpush2.msra.mxu0 0.0
    %1099 = vmatprep.subr.mxu0 0.0
    %1100 = vmatpush2.msra.mxu0 0.0
    %1101 = vmatprep.subr.mxu0 0.0
    %1102 = vmatpush2.msra.mxu0 0.0
    %1103 = vmatprep.mubr.f32.mxu0 0.0
    %1104 = vmatmul.mubr.f32.gmra.mxu0 %v797
    %v1105 = vpop.f32.mrf.mxu0
    %v1106 = vadd.f32 %v874, %v1105
    %v1107 = vpop.f32.mrf.mxu0
    %1108 = vmatprep.mubr.f32.mxu0 0.0
    %1109 = vmatmul.mubr.f32.gmra.mxu0 %v798
    %v1110 = vpop.f32.mrf.mxu0
    %v1111 = vadd.f32 %v874, %v1110
    %v1112 = vpop.f32.mrf.mxu0
    %1113 = vmatprep.mubr.f32.mxu0 0.0
    %1114 = vmatmul.mubr.f32.gmra.mxu0 %v799
    %v1115 = vpop.f32.mrf.mxu0
    %v1116 = vadd.f32 %v874, %v1115
    %v1117 = vpop.f32.mrf.mxu0
    %1118 = vmatprep.mubr.f32.mxu0 0.0
    %1119 = vmatmul.mubr.f32.gmra.mxu0 %v800
    %v1120 = vpop.f32.mrf.mxu0
    %v1121 = vadd.f32 %v874, %v1120
    %v1122 = vpop.f32.mrf.mxu0
    %1123 = vmatprep.mubr.f32.mxu0 0.0
    %1124 = vmatmul.mubr.f32.gmra.mxu0 %v801
    %v1125 = vpop.f32.mrf.mxu0
    %v1126 = vadd.f32 %v874, %v1125
    %v1127 = vpop.f32.mrf.mxu0
    %1128 = vmatprep.mubr.f32.mxu0 0.0
    %1129 = vmatmul.mubr.f32.gmra.mxu0 %v802
    %v1130 = vpop.f32.mrf.mxu0
    %v1131 = vadd.f32 %v874, %v1130
    %v1132 = vpop.f32.mrf.mxu0
    %1133 = vmatprep.mubr.f32.mxu0 0.0
    %1134 = vmatmul.mubr.f32.gmra.mxu0 %v803
    %v1135 = vpop.f32.mrf.mxu0
    %v1136 = vadd.f32 %v874, %v1135
    %v1137 = vpop.f32.mrf.mxu0
    %1138 = vmatprep.mubr.f32.mxu0 0.0
    %1139 = vmatmul.mubr.f32.gmra.mxu0 %v804
    %v1140 = vpop.f32.mrf.mxu0
    %v1141 = vadd.f32 %v874, %v1140
    %v1142 = vpop.f32.mrf.mxu0
    %1143 = vmatprep.mubr.f32.mxu0 0.0
    %1144 = vmatmul.mubr.f32.gmra.mxu0 %v805
    %v1145 = vpop.f32.mrf.mxu0
    %v1146 = vadd.f32 %v874, %v1145
    %v1147 = vpop.f32.mrf.mxu0
    %1148 = vmatprep.mubr.f32.mxu0 0.0
    %1149 = vmatmul.mubr.f32.gmra.mxu0 %v806
    %v1150 = vpop.f32.mrf.mxu0
    %v1151 = vadd.f32 %v874, %v1150
    %v1152 = vpop.f32.mrf.mxu0
    %1153 = vmatprep.mubr.f32.mxu0 0.0
    %1154 = vmatmul.mubr.f32.gmra.mxu0 %v807
    %v1155 = vpop.f32.mrf.mxu0
    %v1156 = vadd.f32 %v874, %v1155
    %v1157 = vpop.f32.mrf.mxu0
    %1158 = vmatprep.mubr.f32.mxu0 0.0
    %1159 = vmatmul.mubr.f32.gmra.mxu0 %v808
    %v1160 = vpop.f32.mrf.mxu0
    %v1161 = vadd.f32 %v874, %v1160
    %v1162 = vpop.f32.mrf.mxu0
    %1163 = vmatprep.mubr.f32.mxu0 0.0
    %1164 = vmatmul.mubr.f32.gmra.mxu0 %v809
    %v1165 = vpop.f32.mrf.mxu0
    %v1166 = vadd.f32 %v874, %v1165
    %v1167 = vpop.f32.mrf.mxu0
    %1168 = vmatprep.mubr.f32.mxu0 0.0
    %1169 = vmatmul.mubr.f32.gmra.mxu0 %v810
    %v1170 = vpop.f32.mrf.mxu0
    %v1171 = vadd.f32 %v874, %v1170
    %v1172 = vpop.f32.mrf.mxu0
    %1173 = vmatprep.mubr.f32.mxu0 0.0
    %1174 = vmatmul.mubr.f32.gmra.mxu0 %v811
    %v1175 = vpop.f32.mrf.mxu0
    %v1176 = vadd.f32 %v874, %v1175
    %v1177 = vpop.f32.mrf.mxu0
    %1178 = vmatprep.mubr.f32.mxu0 0.0
    %1179 = vmatmul.mubr.f32.gmra.mxu0 %v812
    %v1180 = vpop.f32.mrf.mxu0
    %v1181 = vadd.f32 %v874, %v1180
    %v1182 = vpop.f32.mrf.mxu0
    %1183 = vdwg.mxu0
    %v1184 = vld [vmem:[#allocation11] sm:$0xff]
    %v1185 = vld [vmem:[#allocation11 + $0x8] sm:$0xff]
    %v1186 = vld [vmem:[#allocation11 + $0x10] sm:$0xff]
    %v1187 = vld [vmem:[#allocation11 + $0x18] sm:$0xff]
    %v1188 = vld [vmem:[#allocation11 + $0x20] sm:$0xff]
    %v1189 = vld [vmem:[#allocation11 + $0x28] sm:$0xff]
    %v1190 = vld [vmem:[#allocation11 + $0x30] sm:$0xff]
    %v1191 = vld [vmem:[#allocation11 + $0x38] sm:$0xff]
    %v1192 = vld [vmem:[#allocation11 + $0x40] sm:$0xff]
    %v1193 = vld [vmem:[#allocation11 + $0x48] sm:$0xff]
    %v1194 = vld [vmem:[#allocation11 + $0x50] sm:$0xff]
    %v1195 = vld [vmem:[#allocation11 + $0x58] sm:$0xff]
    %v1196 = vld [vmem:[#allocation11 + $0x60] sm:$0xff]
    %v1197 = vld [vmem:[#allocation11 + $0x68] sm:$0xff]
    %v1198 = vld [vmem:[#allocation11 + $0x70] sm:$0xff]
    %v1199 = vld [vmem:[#allocation11 + $0x78] sm:$0xff]
    %v1200 = vld [vmem:[#allocation11 + $0x80] sm:$0xff]
    %v1201 = vld [vmem:[#allocation11 + $0x88] sm:$0xff]
    %v1202 = vld [vmem:[#allocation11 + $0x90] sm:$0xff]
    %v1203 = vld [vmem:[#allocation11 + $0x98] sm:$0xff]
    %v1204 = vld [vmem:[#allocation11 + $0xa0] sm:$0xff]
    %v1205 = vld [vmem:[#allocation11 + $0xa8] sm:$0xff]
    %v1206 = vld [vmem:[#allocation11 + $0xb0] sm:$0xff]
    %v1207 = vld [vmem:[#allocation11 + $0xb8] sm:$0xff]
    %v1208 = vld [vmem:[#allocation11 + $0xc0] sm:$0xff]
    %v1209 = vld [vmem:[#allocation11 + $0xc8] sm:$0xff]
    %v1210 = vld [vmem:[#allocation11 + $0xd0] sm:$0xff]
    %v1211 = vld [vmem:[#allocation11 + $0xd8] sm:$0xff]
    %v1212 = vld [vmem:[#allocation11 + $0xe0] sm:$0xff]
    %v1213 = vld [vmem:[#allocation11 + $0xe8] sm:$0xff]
    %v1214 = vld [vmem:[#allocation11 + $0xf0] sm:$0xff]
    %v1215 = vld [vmem:[#allocation11 + $0xf8] sm:$0xff]
    %v1216 = vld [vmem:[#allocation11 + $0x100] sm:$0xff]
    %v1217 = vld [vmem:[#allocation11 + $0x108] sm:$0xff]
    %v1218 = vld [vmem:[#allocation11 + $0x110] sm:$0xff]
    %v1219 = vld [vmem:[#allocation11 + $0x118] sm:$0xff]
    %v1220 = vld [vmem:[#allocation11 + $0x120] sm:$0xff]
    %v1221 = vld [vmem:[#allocation11 + $0x128] sm:$0xff]
    %v1222 = vld [vmem:[#allocation11 + $0x130] sm:$0xff]
    %v1223 = vld [vmem:[#allocation11 + $0x138] sm:$0xff]
    %v1224 = vld [vmem:[#allocation11 + $0x140] sm:$0xff]
    %v1225 = vld [vmem:[#allocation11 + $0x148] sm:$0xff]
    %v1226 = vld [vmem:[#allocation11 + $0x150] sm:$0xff]
    %v1227 = vld [vmem:[#allocation11 + $0x158] sm:$0xff]
    %v1228 = vld [vmem:[#allocation11 + $0x160] sm:$0xff]
    %v1229 = vld [vmem:[#allocation11 + $0x168] sm:$0xff]
    %v1230 = vld [vmem:[#allocation11 + $0x170] sm:$0xff]
    %v1231 = vld [vmem:[#allocation11 + $0x178] sm:$0xff]
    %v1232 = vld [vmem:[%s7] sm:$0x7]
    %v1234 = vlaneseq
    %v1235 = vshrl.u32 %v1234, 7
    %v1236 = vsub.s32 0, %v1235
    %v1237 = vrot.slane %v1232, %v1236
    %v1238 = vlaneseq
    %v1239 = vshrl.u32 %v1238, 7
    %v1240 = vsub.s32 1, %v1239
    %v1241 = vrot.slane %v1232, %v1240
    %v1242 = vlaneseq
    %v1243 = vshrl.u32 %v1242, 7
    %v1244 = vsub.s32 2, %v1243
    %v1245 = vrot.slane %v1232, %v1244
    %1249 = vmatprep.subr.mxu0 %v1230
    %1250 = vmatpush1.msra.mxu0 %v1229
    %1251 = vmatprep.subr.mxu0 %v1227
    %1252 = vmatpush1.msra.mxu0 %v1226
    %1253 = vmatprep.subr.mxu0 %v1224
    %1254 = vmatpush1.msra.mxu0 %v1223
    %1255 = vmatprep.subr.mxu0 %v1221
    %1256 = vmatpush1.msra.mxu0 %v1220
    %1257 = vmatprep.subr.mxu0 %v1218
    %1258 = vmatpush1.msra.mxu0 %v1217
    %1259 = vmatprep.subr.mxu0 %v1215
    %1260 = vmatpush1.msra.mxu0 %v1214
    %1261 = vmatprep.subr.mxu0 %v1212
    %1262 = vmatpush1.msra.mxu0 %v1211
    %1263 = vmatprep.subr.mxu0 %v1209
    %1264 = vmatpush1.msra.mxu0 %v1208
    %1265 = vmatprep.subr.mxu0 %v1206
    %1266 = vmatpush1.msra.mxu0 %v1205
    %1267 = vmatprep.subr.mxu0 %v1203
    %1268 = vmatpush1.msra.mxu0 %v1202
    %1269 = vmatprep.subr.mxu0 %v1200
    %1270 = vmatpush1.msra.mxu0 %v1199
    %1271 = vmatprep.subr.mxu0 %v1197
    %1272 = vmatpush1.msra.mxu0 %v1196
    %1273 = vmatprep.subr.mxu0 %v1194
    %1274 = vmatpush1.msra.mxu0 %v1193
    %1275 = vmatprep.subr.mxu0 %v1191
    %1276 = vmatpush1.msra.mxu0 %v1190
    %1277 = vmatprep.subr.mxu0 %v1188
    %1278 = vmatpush1.msra.mxu0 %v1187
    %1279 = vmatprep.subr.mxu0 %v1185
    %1280 = vmatpush1.msra.mxu0 %v1184
    %1281 = vmatprep.subr.mxu0 0.0
    %1282 = vmatpush2.msra.mxu0 0.0
    %1283 = vmatprep.subr.mxu0 0.0
    %1284 = vmatpush2.msra.mxu0 0.0
    %1285 = vmatprep.subr.mxu0 0.0
    %1286 = vmatpush2.msra.mxu0 0.0
    %1287 = vmatprep.subr.mxu0 0.0
    %1288 = vmatpush2.msra.mxu0 0.0
    %1289 = vmatprep.subr.mxu0 0.0
    %1290 = vmatpush2.msra.mxu0 0.0
    %1291 = vmatprep.subr.mxu0 0.0
    %1292 = vmatpush2.msra.mxu0 0.0
    %1293 = vmatprep.subr.mxu0 0.0
    %1294 = vmatpush2.msra.mxu0 0.0
    %1295 = vmatprep.subr.mxu0 0.0
    %1296 = vmatpush2.msra.mxu0 0.0
    %1297 = vmatprep.subr.mxu0 0.0
    %1298 = vmatpush2.msra.mxu0 0.0
    %1299 = vmatprep.subr.mxu0 0.0
    %1300 = vmatpush2.msra.mxu0 0.0
    %1301 = vmatprep.subr.mxu0 0.0
    %1302 = vmatpush2.msra.mxu0 0.0
    %1303 = vmatprep.subr.mxu0 0.0
    %1304 = vmatpush2.msra.mxu0 0.0
    %1305 = vmatprep.subr.mxu0 0.0
    %1306 = vmatpush2.msra.mxu0 0.0
    %1307 = vmatprep.subr.mxu0 0.0
    %1308 = vmatpush2.msra.mxu0 0.0
    %1309 = vmatprep.subr.mxu0 0.0
    %1310 = vmatpush2.msra.mxu0 0.0
    %1311 = vmatprep.subr.mxu0 0.0
    %1312 = vmatpush2.msra.mxu0 0.0
    %1313 = vmatprep.mubr.f32.mxu0 0.0
    %1314 = vmatmul.mubr.f32.gmra.mxu0 %v797
    %v1315 = vpop.f32.mrf.mxu0
    %v1316 = vadd.f32 %v1237, %v1315
    %v1317 = vpop.f32.mrf.mxu0
    %v1318 = vadd.f32 %v1241, %v1317
    %1319 = vmatprep.mubr.f32.mxu0 0.0
    %1320 = vmatmul.mubr.f32.gmra.mxu0 %v798
    %v1321 = vpop.f32.mrf.mxu0
    %v1322 = vadd.f32 %v1237, %v1321
    %v1323 = vpop.f32.mrf.mxu0
    %v1324 = vadd.f32 %v1241, %v1323
    %1325 = vmatprep.mubr.f32.mxu0 0.0
    %1326 = vmatmul.mubr.f32.gmra.mxu0 %v799
    %v1327 = vpop.f32.mrf.mxu0
    %v1328 = vadd.f32 %v1237, %v1327
    %v1329 = vpop.f32.mrf.mxu0
    %v1330 = vadd.f32 %v1241, %v1329
    %1331 = vmatprep.mubr.f32.mxu0 0.0
    %1332 = vmatmul.mubr.f32.gmra.mxu0 %v800
    %v1333 = vpop.f32.mrf.mxu0
    %v1334 = vadd.f32 %v1237, %v1333
    %v1335 = vpop.f32.mrf.mxu0
    %v1336 = vadd.f32 %v1241, %v1335
    %1337 = vmatprep.mubr.f32.mxu0 0.0
    %1338 = vmatmul.mubr.f32.gmra.mxu0 %v801
    %v1339 = vpop.f32.mrf.mxu0
    %v1340 = vadd.f32 %v1237, %v1339
    %v1341 = vpop.f32.mrf.mxu0
    %v1342 = vadd.f32 %v1241, %v1341
    %1343 = vmatprep.mubr.f32.mxu0 0.0
    %1344 = vmatmul.mubr.f32.gmra.mxu0 %v802
    %v1345 = vpop.f32.mrf.mxu0
    %v1346 = vadd.f32 %v1237, %v1345
    %v1347 = vpop.f32.mrf.mxu0
    %v1348 = vadd.f32 %v1241, %v1347
    %1349 = vmatprep.mubr.f32.mxu0 0.0
    %1350 = vmatmul.mubr.f32.gmra.mxu0 %v803
    %v1351 = vpop.f32.mrf.mxu0
    %v1352 = vadd.f32 %v1237, %v1351
    %v1353 = vpop.f32.mrf.mxu0
    %v1354 = vadd.f32 %v1241, %v1353
    %1355 = vmatprep.mubr.f32.mxu0 0.0
    %1356 = vmatmul.mubr.f32.gmra.mxu0 %v804
    %v1357 = vpop.f32.mrf.mxu0
    %v1358 = vadd.f32 %v1237, %v1357
    %v1359 = vpop.f32.mrf.mxu0
    %v1360 = vadd.f32 %v1241, %v1359
    %1361 = vmatprep.mubr.f32.mxu0 0.0
    %1362 = vmatmul.mubr.f32.gmra.mxu0 %v805
    %v1363 = vpop.f32.mrf.mxu0
    %v1364 = vadd.f32 %v1237, %v1363
    %v1365 = vpop.f32.mrf.mxu0
    %v1366 = vadd.f32 %v1241, %v1365
    %1367 = vmatprep.mubr.f32.mxu0 0.0
    %1368 = vmatmul.mubr.f32.gmra.mxu0 %v806
    %v1369 = vpop.f32.mrf.mxu0
    %v1370 = vadd.f32 %v1237, %v1369
    %v1371 = vpop.f32.mrf.mxu0
    %v1372 = vadd.f32 %v1241, %v1371
    %1373 = vmatprep.mubr.f32.mxu0 0.0
    %1374 = vmatmul.mubr.f32.gmra.mxu0 %v807
    %v1375 = vpop.f32.mrf.mxu0
    %v1376 = vadd.f32 %v1237, %v1375
    %v1377 = vpop.f32.mrf.mxu0
    %v1378 = vadd.f32 %v1241, %v1377
    %1379 = vmatprep.mubr.f32.mxu0 0.0
    %1380 = vmatmul.mubr.f32.gmra.mxu0 %v808
    %v1381 = vpop.f32.mrf.mxu0
    %v1382 = vadd.f32 %v1237, %v1381
    %v1383 = vpop.f32.mrf.mxu0
    %v1384 = vadd.f32 %v1241, %v1383
    %1385 = vmatprep.mubr.f32.mxu0 0.0
    %1386 = vmatmul.mubr.f32.gmra.mxu0 %v809
    %v1387 = vpop.f32.mrf.mxu0
    %v1388 = vadd.f32 %v1237, %v1387
    %v1389 = vpop.f32.mrf.mxu0
    %v1390 = vadd.f32 %v1241, %v1389
    %1391 = vmatprep.mubr.f32.mxu0 0.0
    %1392 = vmatmul.mubr.f32.gmra.mxu0 %v810
    %v1393 = vpop.f32.mrf.mxu0
    %v1394 = vadd.f32 %v1237, %v1393
    %v1395 = vpop.f32.mrf.mxu0
    %v1396 = vadd.f32 %v1241, %v1395
    %1397 = vmatprep.mubr.f32.mxu0 0.0
    %1398 = vmatmul.mubr.f32.gmra.mxu0 %v811
    %v1399 = vpop.f32.mrf.mxu0
    %v1400 = vadd.f32 %v1237, %v1399
    %v1401 = vpop.f32.mrf.mxu0
    %v1402 = vadd.f32 %v1241, %v1401
    %1403 = vmatprep.mubr.f32.mxu0 0.0
    %1404 = vmatmul.mubr.f32.gmra.mxu0 %v812
    %v1405 = vpop.f32.mrf.mxu0
    %v1406 = vadd.f32 %v1237, %v1405
    %v1407 = vpop.f32.mrf.mxu0
    %v1408 = vadd.f32 %v1241, %v1407
    %1409 = vdwg.mxu0
    %1410 = vmatprep.subr.mxu0 0.0
    %1411 = vmatpush1.msra.mxu0 %v1231
    %1412 = vmatprep.subr.mxu0 0.0
    %1413 = vmatpush1.msra.mxu0 %v1228
    %1414 = vmatprep.subr.mxu0 0.0
    %1415 = vmatpush1.msra.mxu0 %v1225
    %1416 = vmatprep.subr.mxu0 0.0
    %1417 = vmatpush1.msra.mxu0 %v1222
    %1418 = vmatprep.subr.mxu0 0.0
    %1419 = vmatpush1.msra.mxu0 %v1219
    %1420 = vmatprep.subr.mxu0 0.0
    %1421 = vmatpush1.msra.mxu0 %v1216
    %1422 = vmatprep.subr.mxu0 0.0
    %1423 = vmatpush1.msra.mxu0 %v1213
    %1424 = vmatprep.subr.mxu0 0.0
    %1425 = vmatpush1.msra.mxu0 %v1210
    %1426 = vmatprep.subr.mxu0 0.0
    %1427 = vmatpush1.msra.mxu0 %v1207
    %1428 = vmatprep.subr.mxu0 0.0
    %1429 = vmatpush1.msra.mxu0 %v1204
    %1430 = vmatprep.subr.mxu0 0.0
    %1431 = vmatpush1.msra.mxu0 %v1201
    %1432 = vmatprep.subr.mxu0 0.0
    %1433 = vmatpush1.msra.mxu0 %v1198
    %1434 = vmatprep.subr.mxu0 0.0
    %1435 = vmatpush1.msra.mxu0 %v1195
    %1436 = vmatprep.subr.mxu0 0.0
    %1437 = vmatpush1.msra.mxu0 %v1192
    %1438 = vmatprep.subr.mxu0 0.0
    %1439 = vmatpush1.msra.mxu0 %v1189
    %1440 = vmatprep.subr.mxu0 0.0
    %1441 = vmatpush1.msra.mxu0 %v1186
    %1442 = vmatprep.subr.mxu0 0.0
    %1443 = vmatpush2.msra.mxu0 0.0
    %1444 = vmatprep.subr.mxu0 0.0
    %1445 = vmatpush2.msra.mxu0 0.0
    %1446 = vmatprep.subr.mxu0 0.0
    %1447 = vmatpush2.msra.mxu0 0.0
    %1448 = vmatprep.subr.mxu0 0.0
    %1449 = vmatpush2.msra.mxu0 0.0
    %1450 = vmatprep.subr.mxu0 0.0
    %1451 = vmatpush2.msra.mxu0 0.0
    %1452 = vmatprep.subr.mxu0 0.0
    %1453 = vmatpush2.msra.mxu0 0.0
    %1454 = vmatprep.subr.mxu0 0.0
    %1455 = vmatpush2.msra.mxu0 0.0
    %1456 = vmatprep.subr.mxu0 0.0
    %1457 = vmatpush2.msra.mxu0 0.0
    %1458 = vmatprep.subr.mxu0 0.0
    %1459 = vmatpush2.msra.mxu0 0.0
    %1460 = vmatprep.subr.mxu0 0.0
    %1461 = vmatpush2.msra.mxu0 0.0
    %1462 = vmatprep.subr.mxu0 0.0
    %1463 = vmatpush2.msra.mxu0 0.0
    %1464 = vmatprep.subr.mxu0 0.0
    %1465 = vmatpush2.msra.mxu0 0.0
    %1466 = vmatprep.subr.mxu0 0.0
    %1467 = vmatpush2.msra.mxu0 0.0
    %1468 = vmatprep.subr.mxu0 0.0
    %1469 = vmatpush2.msra.mxu0 0.0
    %1470 = vmatprep.subr.mxu0 0.0
    %1471 = vmatpush2.msra.mxu0 0.0
    %1472 = vmatprep.subr.mxu0 0.0
    %1473 = vmatpush2.msra.mxu0 0.0
    %1474 = vmatprep.mubr.f32.mxu0 0.0
    %1475 = vmatmul.mubr.f32.gmra.mxu0 %v797
    %v1476 = vpop.f32.mrf.mxu0
    %v1477 = vadd.f32 %v1245, %v1476
    %v1478 = vpop.f32.mrf.mxu0
    %1479 = vmatprep.mubr.f32.mxu0 0.0
    %1480 = vmatmul.mubr.f32.gmra.mxu0 %v798
    %v1481 = vpop.f32.mrf.mxu0
    %v1482 = vadd.f32 %v1245, %v1481
    %v1483 = vpop.f32.mrf.mxu0
    %1484 = vmatprep.mubr.f32.mxu0 0.0
    %1485 = vmatmul.mubr.f32.gmra.mxu0 %v799
    %v1486 = vpop.f32.mrf.mxu0
    %v1487 = vadd.f32 %v1245, %v1486
    %v1488 = vpop.f32.mrf.mxu0
    %1489 = vmatprep.mubr.f32.mxu0 0.0
    %1490 = vmatmul.mubr.f32.gmra.mxu0 %v800
    %v1491 = vpop.f32.mrf.mxu0
    %v1492 = vadd.f32 %v1245, %v1491
    %v1493 = vpop.f32.mrf.mxu0
    %1494 = vmatprep.mubr.f32.mxu0 0.0
    %1495 = vmatmul.mubr.f32.gmra.mxu0 %v801
    %v1496 = vpop.f32.mrf.mxu0
    %v1497 = vadd.f32 %v1245, %v1496
    %v1498 = vpop.f32.mrf.mxu0
    %1499 = vmatprep.mubr.f32.mxu0 0.0
    %1500 = vmatmul.mubr.f32.gmra.mxu0 %v802
    %v1501 = vpop.f32.mrf.mxu0
    %v1502 = vadd.f32 %v1245, %v1501
    %v1503 = vpop.f32.mrf.mxu0
    %1504 = vmatprep.mubr.f32.mxu0 0.0
    %1505 = vmatmul.mubr.f32.gmra.mxu0 %v803
    %v1506 = vpop.f32.mrf.mxu0
    %v1507 = vadd.f32 %v1245, %v1506
    %v1508 = vpop.f32.mrf.mxu0
    %1509 = vmatprep.mubr.f32.mxu0 0.0
    %1510 = vmatmul.mubr.f32.gmra.mxu0 %v804
    %v1511 = vpop.f32.mrf.mxu0
    %v1512 = vadd.f32 %v1245, %v1511
    %v1513 = vpop.f32.mrf.mxu0
    %1514 = vmatprep.mubr.f32.mxu0 0.0
    %1515 = vmatmul.mubr.f32.gmra.mxu0 %v805
    %v1516 = vpop.f32.mrf.mxu0
    %v1517 = vadd.f32 %v1245, %v1516
    %v1518 = vpop.f32.mrf.mxu0
    %1519 = vmatprep.mubr.f32.mxu0 0.0
    %1520 = vmatmul.mubr.f32.gmra.mxu0 %v806
    %v1521 = vpop.f32.mrf.mxu0
    %v1522 = vadd.f32 %v1245, %v1521
    %v1523 = vpop.f32.mrf.mxu0
    %1524 = vmatprep.mubr.f32.mxu0 0.0
    %1525 = vmatmul.mubr.f32.gmra.mxu0 %v807
    %v1526 = vpop.f32.mrf.mxu0
    %v1527 = vadd.f32 %v1245, %v1526
    %v1528 = vpop.f32.mrf.mxu0
    %1529 = vmatprep.mubr.f32.mxu0 0.0
    %1530 = vmatmul.mubr.f32.gmra.mxu0 %v808
    %v1531 = vpop.f32.mrf.mxu0
    %v1532 = vadd.f32 %v1245, %v1531
    %v1533 = vpop.f32.mrf.mxu0
    %1534 = vmatprep.mubr.f32.mxu0 0.0
    %1535 = vmatmul.mubr.f32.gmra.mxu0 %v809
    %v1536 = vpop.f32.mrf.mxu0
    %v1537 = vadd.f32 %v1245, %v1536
    %v1538 = vpop.f32.mrf.mxu0
    %1539 = vmatprep.mubr.f32.mxu0 0.0
    %1540 = vmatmul.mubr.f32.gmra.mxu0 %v810
    %v1541 = vpop.f32.mrf.mxu0
    %v1542 = vadd.f32 %v1245, %v1541
    %v1543 = vpop.f32.mrf.mxu0
    %1544 = vmatprep.mubr.f32.mxu0 0.0
    %1545 = vmatmul.mubr.f32.gmra.mxu0 %v811
    %v1546 = vpop.f32.mrf.mxu0
    %v1547 = vadd.f32 %v1245, %v1546
    %v1548 = vpop.f32.mrf.mxu0
    %1549 = vmatprep.mubr.f32.mxu0 0.0
    %1550 = vmatmul.mubr.f32.gmra.mxu0 %v812
    %v1551 = vpop.f32.mrf.mxu0
    %v1552 = vadd.f32 %v1245, %v1551
    %v1553 = vpop.f32.mrf.mxu0
    %1554 = vdwg.mxu0
    %v1555 = vadd.f32 %v945, %v1316
    %v1556 = vadd.f32 %v951, %v1322
    %v1557 = vadd.f32 %v957, %v1328
    %v1558 = vadd.f32 %v963, %v1334
    %v1559 = vadd.f32 %v969, %v1340
    %v1560 = vadd.f32 %v975, %v1346
    %v1561 = vadd.f32 %v981, %v1352
    %v1562 = vadd.f32 %v987, %v1358
    %v1563 = vadd.f32 %v993, %v1364
    %v1564 = vadd.f32 %v999, %v1370
    %v1565 = vadd.f32 %v1005, %v1376
    %v1566 = vadd.f32 %v1011, %v1382
    %v1567 = vadd.f32 %v1017, %v1388
    %v1568 = vadd.f32 %v1023, %v1394
    %v1569 = vadd.f32 %v1029, %v1400
    %v1570 = vadd.f32 %v1035, %v1406
    %v1571 = vxor.u32 %v1555, 2147483648
    %v1572 = vxor.u32 %v1556, 2147483648
    %v1573 = vxor.u32 %v1557, 2147483648
    %v1574 = vxor.u32 %v1558, 2147483648
    %v1575 = vxor.u32 %v1559, 2147483648
    %v1576 = vxor.u32 %v1560, 2147483648
    %v1577 = vxor.u32 %v1561, 2147483648
    %v1578 = vxor.u32 %v1562, 2147483648
    %v1579 = vxor.u32 %v1563, 2147483648
    %v1580 = vxor.u32 %v1564, 2147483648
    %v1581 = vxor.u32 %v1565, 2147483648
    %v1582 = vxor.u32 %v1566, 2147483648
    %v1583 = vxor.u32 %v1567, 2147483648
    %v1584 = vxor.u32 %v1568, 2147483648
    %v1585 = vxor.u32 %v1569, 2147483648
    %v1586 = vxor.u32 %v1570, 2147483648
    %v1587 = vmul.f32 %v1571, 1.442695
    %v1588 = vpow.pop %v1587
    %v1589 = vmul.f32 %v1572, 1.442695
    %v1590 = vpow.pop %v1589
    %v1591 = vmul.f32 %v1573, 1.442695
    %v1592 = vpow.pop %v1591
    %v1593 = vmul.f32 %v1574, 1.442695
    %v1594 = vpow.pop %v1593
    %v1595 = vmul.f32 %v1575, 1.442695
    %v1596 = vpow.pop %v1595
    %v1597 = vmul.f32 %v1576, 1.442695
    %v1598 = vpow.pop %v1597
    %v1599 = vmul.f32 %v1577, 1.442695
    %v1600 = vpow.pop %v1599
    %v1601 = vmul.f32 %v1578, 1.442695
    %v1602 = vpow.pop %v1601
    %v1603 = vmul.f32 %v1579, 1.442695
    %v1604 = vpow.pop %v1603
    %v1605 = vmul.f32 %v1580, 1.442695
    %v1606 = vpow.pop %v1605
    %v1607 = vmul.f32 %v1581, 1.442695
    %v1608 = vpow.pop %v1607
    %v1609 = vmul.f32 %v1582, 1.442695
    %v1610 = vpow.pop %v1609
    %v1611 = vmul.f32 %v1583, 1.442695
    %v1612 = vpow.pop %v1611
    %v1613 = vmul.f32 %v1584, 1.442695
    %v1614 = vpow.pop %v1613
    %v1615 = vmul.f32 %v1585, 1.442695
    %v1616 = vpow.pop %v1615
    %v1617 = vmul.f32 %v1586, 1.442695
    %v1618 = vpow.pop %v1617
    %v1619 = vadd.f32 %v1588, 1.0
    %v1620 = vadd.f32 %v1590, 1.0
    %v1621 = vadd.f32 %v1592, 1.0
    %v1622 = vadd.f32 %v1594, 1.0
    %v1623 = vadd.f32 %v1596, 1.0
    %v1624 = vadd.f32 %v1598, 1.0
    %v1625 = vadd.f32 %v1600, 1.0
    %v1626 = vadd.f32 %v1602, 1.0
    %v1627 = vadd.f32 %v1604, 1.0
    %v1628 = vadd.f32 %v1606, 1.0
    %v1629 = vadd.f32 %v1608, 1.0
    %v1630 = vadd.f32 %v1610, 1.0
    %v1631 = vadd.f32 %v1612, 1.0
    %v1632 = vadd.f32 %v1614, 1.0
    %v1633 = vadd.f32 %v1616, 1.0
    %v1634 = vadd.f32 %v1618, 1.0
    %v1635 = vrcp.pop %v1619
    %v1636 = vmul.f32 1.0, %v1635
    %v1637 = vrcp.pop %v1620
    %v1638 = vmul.f32 1.0, %v1637
    %v1639 = vrcp.pop %v1621
    %v1640 = vmul.f32 1.0, %v1639
    %v1641 = vrcp.pop %v1622
    %v1642 = vmul.f32 1.0, %v1641
    %v1643 = vrcp.pop %v1623
    %v1644 = vmul.f32 1.0, %v1643
    %v1645 = vrcp.pop %v1624
    %v1646 = vmul.f32 1.0, %v1645
    %v1647 = vrcp.pop %v1625
    %v1648 = vmul.f32 1.0, %v1647
    %v1649 = vrcp.pop %v1626
    %v1650 = vmul.f32 1.0, %v1649
    %v1651 = vrcp.pop %v1627
    %v1652 = vmul.f32 1.0, %v1651
    %v1653 = vrcp.pop %v1628
    %v1654 = vmul.f32 1.0, %v1653
    %v1655 = vrcp.pop %v1629
    %v1656 = vmul.f32 1.0, %v1655
    %v1657 = vrcp.pop %v1630
    %v1658 = vmul.f32 1.0, %v1657
    %v1659 = vrcp.pop %v1631
    %v1660 = vmul.f32 1.0, %v1659
    %v1661 = vrcp.pop %v1632
    %v1662 = vmul.f32 1.0, %v1661
    %v1663 = vrcp.pop %v1633
    %v1664 = vmul.f32 1.0, %v1663
    %v1665 = vrcp.pop %v1634
    %v1666 = vmul.f32 1.0, %v1665
    %v1667 = vadd.f32 %v947, %v1318
    %v1668 = vadd.f32 %v953, %v1324
    %v1669 = vadd.f32 %v959, %v1330
    %v1670 = vadd.f32 %v965, %v1336
    %v1671 = vadd.f32 %v971, %v1342
    %v1672 = vadd.f32 %v977, %v1348
    %v1673 = vadd.f32 %v983, %v1354
    %v1674 = vadd.f32 %v989, %v1360
    %v1675 = vadd.f32 %v995, %v1366
    %v1676 = vadd.f32 %v1001, %v1372
    %v1677 = vadd.f32 %v1007, %v1378
    %v1678 = vadd.f32 %v1013, %v1384
    %v1679 = vadd.f32 %v1019, %v1390
    %v1680 = vadd.f32 %v1025, %v1396
    %v1681 = vadd.f32 %v1031, %v1402
    %v1682 = vadd.f32 %v1037, %v1408
    %v1683 = vxor.u32 %v1667, 2147483648
    %v1684 = vxor.u32 %v1668, 2147483648
    %v1685 = vxor.u32 %v1669, 2147483648
    %v1686 = vxor.u32 %v1670, 2147483648
    %v1687 = vxor.u32 %v1671, 2147483648
    %v1688 = vxor.u32 %v1672, 2147483648
    %v1689 = vxor.u32 %v1673, 2147483648
    %v1690 = vxor.u32 %v1674, 2147483648
    %v1691 = vxor.u32 %v1675, 2147483648
    %v1692 = vxor.u32 %v1676, 2147483648
    %v1693 = vxor.u32 %v1677, 2147483648
    %v1694 = vxor.u32 %v1678, 2147483648
    %v1695 = vxor.u32 %v1679, 2147483648
    %v1696 = vxor.u32 %v1680, 2147483648
    %v1697 = vxor.u32 %v1681, 2147483648
    %v1698 = vxor.u32 %v1682, 2147483648
    %v1699 = vmul.f32 %v1683, 1.442695
    %v1700 = vpow.pop %v1699
    %v1701 = vmul.f32 %v1684, 1.442695
    %v1702 = vpow.pop %v1701
    %v1703 = vmul.f32 %v1685, 1.442695
    %v1704 = vpow.pop %v1703
    %v1705 = vmul.f32 %v1686, 1.442695
    %v1706 = vpow.pop %v1705
    %v1707 = vmul.f32 %v1687, 1.442695
    %v1708 = vpow.pop %v1707
    %v1709 = vmul.f32 %v1688, 1.442695
    %v1710 = vpow.pop %v1709
    %v1711 = vmul.f32 %v1689, 1.442695
    %v1712 = vpow.pop %v1711
    %v1713 = vmul.f32 %v1690, 1.442695
    %v1714 = vpow.pop %v1713
    %v1715 = vmul.f32 %v1691, 1.442695
    %v1716 = vpow.pop %v1715
    %v1717 = vmul.f32 %v1692, 1.442695
    %v1718 = vpow.pop %v1717
    %v1719 = vmul.f32 %v1693, 1.442695
    %v1720 = vpow.pop %v1719
    %v1721 = vmul.f32 %v1694, 1.442695
    %v1722 = vpow.pop %v1721
    %v1723 = vmul.f32 %v1695, 1.442695
    %v1724 = vpow.pop %v1723
    %v1725 = vmul.f32 %v1696, 1.442695
    %v1726 = vpow.pop %v1725
    %v1727 = vmul.f32 %v1697, 1.442695
    %v1728 = vpow.pop %v1727
    %v1729 = vmul.f32 %v1698, 1.442695
    %v1730 = vpow.pop %v1729
    %v1731 = vadd.f32 %v1700, 1.0
    %v1732 = vadd.f32 %v1702, 1.0
    %v1733 = vadd.f32 %v1704, 1.0
    %v1734 = vadd.f32 %v1706, 1.0
    %v1735 = vadd.f32 %v1708, 1.0
    %v1736 = vadd.f32 %v1710, 1.0
    %v1737 = vadd.f32 %v1712, 1.0
    %v1738 = vadd.f32 %v1714, 1.0
    %v1739 = vadd.f32 %v1716, 1.0
    %v1740 = vadd.f32 %v1718, 1.0
    %v1741 = vadd.f32 %v1720, 1.0
    %v1742 = vadd.f32 %v1722, 1.0
    %v1743 = vadd.f32 %v1724, 1.0
    %v1744 = vadd.f32 %v1726, 1.0
    %v1745 = vadd.f32 %v1728, 1.0
    %v1746 = vadd.f32 %v1730, 1.0
    %v1747 = vrcp.pop %v1731
    %v1748 = vmul.f32 1.0, %v1747
    %v1749 = vrcp.pop %v1732
    %v1750 = vmul.f32 1.0, %v1749
    %v1751 = vrcp.pop %v1733
    %v1752 = vmul.f32 1.0, %v1751
    %v1753 = vrcp.pop %v1734
    %v1754 = vmul.f32 1.0, %v1753
    %v1755 = vrcp.pop %v1735
    %v1756 = vmul.f32 1.0, %v1755
    %v1757 = vrcp.pop %v1736
    %v1758 = vmul.f32 1.0, %v1757
    %v1759 = vrcp.pop %v1737
    %v1760 = vmul.f32 1.0, %v1759
    %v1761 = vrcp.pop %v1738
    %v1762 = vmul.f32 1.0, %v1761
    %v1763 = vrcp.pop %v1739
    %v1764 = vmul.f32 1.0, %v1763
    %v1765 = vrcp.pop %v1740
    %v1766 = vmul.f32 1.0, %v1765
    %v1767 = vrcp.pop %v1741
    %v1768 = vmul.f32 1.0, %v1767
    %v1769 = vrcp.pop %v1742
    %v1770 = vmul.f32 1.0, %v1769
    %v1771 = vrcp.pop %v1743
    %v1772 = vmul.f32 1.0, %v1771
    %v1773 = vrcp.pop %v1744
    %v1774 = vmul.f32 1.0, %v1773
    %v1775 = vrcp.pop %v1745
    %v1776 = vmul.f32 1.0, %v1775
    %v1777 = vrcp.pop %v1746
    %v1778 = vmul.f32 1.0, %v1777
    %v1779 = vmul.f32 %v1636, %v1477
    %v1780 = vmul.f32 %v1638, %v1482
    %v1781 = vmul.f32 %v1640, %v1487
    %v1782 = vmul.f32 %v1642, %v1492
    %v1783 = vmul.f32 %v1644, %v1497
    %v1784 = vmul.f32 %v1646, %v1502
    %v1785 = vmul.f32 %v1648, %v1507
    %v1786 = vmul.f32 %v1650, %v1512
    %v1787 = vmul.f32 %v1652, %v1517
    %v1788 = vmul.f32 %v1654, %v1522
    %v1789 = vmul.f32 %v1656, %v1527
    %v1790 = vmul.f32 %v1658, %v1532
    %v1791 = vmul.f32 %v1660, %v1537
    %v1792 = vmul.f32 %v1662, %v1542
    %v1793 = vmul.f32 %v1664, %v1547
    %v1794 = vmul.f32 %v1666, %v1552
    %v1795 = vadd.f32 %v1106, %v1779
    %v1796 = vadd.f32 %v1111, %v1780
    %v1797 = vadd.f32 %v1116, %v1781
    %v1798 = vadd.f32 %v1121, %v1782
    %v1799 = vadd.f32 %v1126, %v1783
    %v1800 = vadd.f32 %v1131, %v1784
    %v1801 = vadd.f32 %v1136, %v1785
    %v1802 = vadd.f32 %v1141, %v1786
    %v1803 = vadd.f32 %v1146, %v1787
    %v1804 = vadd.f32 %v1151, %v1788
    %v1805 = vadd.f32 %v1156, %v1789
    %v1806 = vadd.f32 %v1161, %v1790
    %v1807 = vadd.f32 %v1166, %v1791
    %v1808 = vadd.f32 %v1171, %v1792
    %v1809 = vadd.f32 %v1176, %v1793
    %v1810 = vadd.f32 %v1181, %v1794
    %v1811 = vtanh.pop %v1795
    %v1812 = vtanh.pop %v1796
    %v1813 = vtanh.pop %v1797
    %v1814 = vtanh.pop %v1798
    %v1815 = vtanh.pop %v1799
    %v1816 = vtanh.pop %v1800
    %v1817 = vtanh.pop %v1801
    %v1818 = vtanh.pop %v1802
    %v1819 = vtanh.pop %v1803
    %v1820 = vtanh.pop %v1804
    %v1821 = vtanh.pop %v1805
    %v1822 = vtanh.pop %v1806
    %v1823 = vtanh.pop %v1807
    %v1824 = vtanh.pop %v1808
    %v1825 = vtanh.pop %v1809
    %v1826 = vtanh.pop %v1810
    %v1827 = vsub.f32 1.0, %v1748
    %v1828 = vsub.f32 1.0, %v1750
    %v1829 = vsub.f32 1.0, %v1752
    %v1830 = vsub.f32 1.0, %v1754
    %v1831 = vsub.f32 1.0, %v1756
    %v1832 = vsub.f32 1.0, %v1758
    %v1833 = vsub.f32 1.0, %v1760
    %v1834 = vsub.f32 1.0, %v1762
    %v1835 = vsub.f32 1.0, %v1764
    %v1836 = vsub.f32 1.0, %v1766
    %v1837 = vsub.f32 1.0, %v1768
    %v1838 = vsub.f32 1.0, %v1770
    %v1839 = vsub.f32 1.0, %v1772
    %v1840 = vsub.f32 1.0, %v1774
    %v1841 = vsub.f32 1.0, %v1776
    %v1842 = vsub.f32 1.0, %v1778
    %v1843 = vmul.f32 %v1827, %v1811
    %v1844 = vmul.f32 %v1828, %v1812
    %v1845 = vmul.f32 %v1829, %v1813
    %v1846 = vmul.f32 %v1830, %v1814
    %v1847 = vmul.f32 %v1831, %v1815
    %v1848 = vmul.f32 %v1832, %v1816
    %v1849 = vmul.f32 %v1833, %v1817
    %v1850 = vmul.f32 %v1834, %v1818
    %v1851 = vmul.f32 %v1835, %v1819
    %v1852 = vmul.f32 %v1836, %v1820
    %v1853 = vmul.f32 %v1837, %v1821
    %v1854 = vmul.f32 %v1838, %v1822
    %v1855 = vmul.f32 %v1839, %v1823
    %v1856 = vmul.f32 %v1840, %v1824
    %v1857 = vmul.f32 %v1841, %v1825
    %v1858 = vmul.f32 %v1842, %v1826
    %v1859 = vmul.f32 %v1748, %v797
    %v1860 = vmul.f32 %v1750, %v798
    %v1861 = vmul.f32 %v1752, %v799
    %v1862 = vmul.f32 %v1754, %v800
    %v1863 = vmul.f32 %v1756, %v801
    %v1864 = vmul.f32 %v1758, %v802
    %v1865 = vmul.f32 %v1760, %v803
    %v1866 = vmul.f32 %v1762, %v804
    %v1867 = vmul.f32 %v1764, %v805
    %v1868 = vmul.f32 %v1766, %v806
    %v1869 = vmul.f32 %v1768, %v807
    %v1870 = vmul.f32 %v1770, %v808
    %v1871 = vmul.f32 %v1772, %v809
    %v1872 = vmul.f32 %v1774, %v810
    %v1873 = vmul.f32 %v1776, %v811
    %v1874 = vmul.f32 %v1778, %v812
    %v1875 = vadd.f32 %v1843, %v1859
    %v1876 = vadd.f32 %v1844, %v1860
    %v1877 = vadd.f32 %v1845, %v1861
    %v1878 = vadd.f32 %v1846, %v1862
    %v1879 = vadd.f32 %v1847, %v1863
    %v1880 = vadd.f32 %v1848, %v1864
    %v1881 = vadd.f32 %v1849, %v1865
    %v1882 = vadd.f32 %v1850, %v1866
    %v1883 = vadd.f32 %v1851, %v1867
    %v1884 = vadd.f32 %v1852, %v1868
    %v1885 = vadd.f32 %v1853, %v1869
    %v1886 = vadd.f32 %v1854, %v1870
    %v1887 = vadd.f32 %v1855, %v1871
    %v1888 = vadd.f32 %v1856, %v1872
    %v1889 = vadd.f32 %v1857, %v1873
    %v1890 = vadd.f32 %v1858, %v1874
    %1891 = vst [vmem:[#allocation13] sm:$0xff] %v1875
    %1892 = vst [vmem:[#allocation13 + $0x8] sm:$0xff] %v1876
    %1893 = vst [vmem:[#allocation13 + $0x10] sm:$0xff] %v1877
    %1894 = vst [vmem:[#allocation13 + $0x18] sm:$0xff] %v1878
    %1895 = vst [vmem:[#allocation13 + $0x20] sm:$0xff] %v1879
    %1896 = vst [vmem:[#allocation13 + $0x28] sm:$0xff] %v1880
    %1897 = vst [vmem:[#allocation13 + $0x30] sm:$0xff] %v1881
    %1898 = vst [vmem:[#allocation13 + $0x38] sm:$0xff] %v1882
    %1899 = vst [vmem:[#allocation13 + $0x40] sm:$0xff] %v1883
    %1900 = vst [vmem:[#allocation13 + $0x48] sm:$0xff] %v1884
    %1901 = vst [vmem:[#allocation13 + $0x50] sm:$0xff] %v1885
    %1902 = vst [vmem:[#allocation13 + $0x58] sm:$0xff] %v1886
    %1903 = vst [vmem:[#allocation13 + $0x60] sm:$0xff] %v1887
    %1904 = vst [vmem:[#allocation13 + $0x68] sm:$0xff] %v1888
    %1905 = vst [vmem:[#allocation13 + $0x70] sm:$0xff] %v1889
    %1906 = vst [vmem:[#allocation13 + $0x78] sm:$0xff] %v1890
    // Predicated region
    $region58: #{tpu_custom_call.1} parent=1 // pred_check
      _
    $region59: #{tpu_custom_call.1} parent=1 // pred_check_branch
      %1908 = sbr.rel (0) target = $region61
    $region60: #{tpu_custom_call.1} parent=1 // pred_region
      %s1910 = ssub.s32 2048, 2048
      %1911 = vsyncadd [#allocation4], %s1910
      %s1912 = sshll.u32 [#allocation13], 4
      %s1913 = int_to_ptr.vmem [resolvable:$true] %s1912
      %1918 = dma.vmem_to_hbm [thread:$0]  %s1913, 2048, %s8, [#allocation4], 128, 128, 8
    $region61: #{tpu_custom_call.1} parent=1 // pred_fallthru
      _
    // Predicated region
    $region62: #{tpu_custom_call.1} parent=1 // pred_check
      _
    $region63: #{tpu_custom_call.1} parent=1 // pred_check_branch
      %1920 = sbr.rel (0) target = $region65
    $region64: #{tpu_custom_call.1} parent=1 // pred_region
      %1921 = dma.done [#allocation4], 2048
    $region65: #{tpu_custom_call.1} parent=1 // pred_fallthru
      _
    %1922 = vsyncpa [#allocation3], 1
    %1923 = vsyncpa [#allocation6], 1
    %1924 = vsyncpa [#allocation9], 1
    %1925 = vsyncpa [#allocation12], 1
    %1926 = vsyncpa [#allocation4], 1

</llo_original>
